<compile_context>
chip_gen: v7x
topology: tpu7x:2x2x1
jax: 0.10.0
libtpu: 0.0.40
codegen_flags: <defaults>
</compile_context>

<pallas_src>
import jax
import jax.numpy as jnp
from jax import lax
from jax.experimental import pallas as pl
from jax.experimental.pallas import tpu as pltpu


_LANE = 128


def _round_up(x, m):
    return ((x + m - 1) // m) * m


def _ceil_div(a, b):
    return -(-a // b)


def _make_vgnn_kernel(agents_per_graph):
    A = agents_per_graph

    def kernel(
        x_ref,                                    # [T, N, F] bf16; N = bb * A
        w_ih, w_hh, b_lstm,                       # fused LSTM, gate order (i,f,o,g)
        w_enc, b_enc, w_zm, b_zm, w_phiz, b_phiz,  # variational head
        w_pool1, b_pool1, w_sn1, b_neigh1,        # SAGE1: w_sn1 = [w_self1; w_neigh1]
        w_pool2, b_pool2, w_sn2, b_neigh2,        # SAGE2 (output lane-padded)
        out_ref,                                  # [bb, Gp]
        gx_ref,                                   # scratch [T, N, 4H] f32
    ):
        T, N, F = x_ref.shape
        H = w_hh.shape[0]
        bb = N // A

        def mm(a, w):
            return jnp.dot(a.astype(w.dtype), w,
                           preferred_element_type=jnp.float32)

        # ---- LSTM: input projection hoisted out of the sequential loop ------
        x2d = x_ref[...].reshape(T * N, F)
        gx_ref[...] = (mm(x2d, w_ih[...]) + b_lstm[...]).reshape(T, N, 4 * H)

        # Gate order (i, f, o, g): sigmoid on the first 3H lanes, tanh on the
        # last H lanes. One full-width (128-lane) activation select per step.
        lane = lax.broadcasted_iota(jnp.int32, (N, 4 * H), 1)
        sig_mask = lane < 3 * H
        w_hh_v = w_hh[...]

        def lstm_step(t, carry):
            h, c = carry
            g_pre = gx_ref[t] + jnp.dot(h.astype(w_hh_v.dtype), w_hh_v,
                                        preferred_element_type=jnp.float32)
            act = jnp.where(sig_mask, jax.nn.sigmoid(g_pre), jnp.tanh(g_pre))
            gi = act[:, 0:H]
            gf = act[:, H:2 * H]
            go = act[:, 2 * H:3 * H]
            gg = act[:, 3 * H:4 * H]
            c = gf * c + gi * gg
            h = go * jnp.tanh(c)
            return h, c

        h0 = jnp.zeros((N, H), jnp.float32)
        c0 = jnp.zeros((N, H), jnp.float32)
        h, _ = lax.fori_loop(0, T, lstm_step, (h0, c0), unroll=True)

        # ---- Variational head (deterministic encoder mean) -------------------
        # TODO(synk): reparameterized sampling of z (enc_std noise) is omitted;
        #             the deterministic encoder mean feeds phi_z, so hn has 2H feats.
        enc = jax.nn.relu(mm(h, w_enc[...]) + b_enc[...])
        z_mean = mm(enc, w_zm[...]) + b_zm[...]
        phi_z = jax.nn.relu(mm(z_mean, w_phiz[...]) + b_phiz[...])
        hn = jnp.concatenate([h, phi_z], axis=-1)              # [N, 2H]

        # ---- SAGEConv('pool') x2, per-graph exclude-self max (top-2 trick) ---
        # fully_connected(A) + add_reverse_edges => in-neighbors of node i are
        # all other nodes of its own graph.
        def sage_pool(nodes, w_pool, b_pool, w_sn, b_out):
            din = nodes.shape[-1]
            pooled = jax.nn.relu(mm(nodes, w_pool[...]) + b_pool[...])  # [N,din] >= 0
            pg = pooled.reshape(bb, A, din)
            max1 = jnp.max(pg, axis=1, keepdims=True)                   # [bb,1,din]
            is_max = pg == max1
            n_max = jnp.sum(is_max.astype(jnp.float32), axis=1, keepdims=True)
            # max with one argmax occurrence removed (0-fill exact: pooled >= 0)
            max_rest = jnp.max(jnp.where(is_max, 0.0, pg), axis=1, keepdims=True)
            max2 = jnp.where(n_max > 1.0, max1, max_rest)
            h_neigh = jnp.where(is_max, max2, max1).reshape(N, din)
            w = w_sn[...]                                               # [2*din, dout]
            return (mm(nodes, w[0:din, :]) + mm(h_neigh, w[din:2 * din, :])
                    + b_out[...])

        res = jnp.tanh(sage_pool(hn, w_pool1, b_pool1, w_sn1, b_neigh1))   # [N, H]
        res = sage_pool(res, w_pool2, b_pool2, w_sn2, b_neigh2)            # [N, Gp]

        # ---- AvgPooling: per-graph mean (sublane reduction, lane-dense store)
        Gp = res.shape[-1]
        out_ref[...] = jnp.sum(res.reshape(bb, A, Gp), axis=1) * (1.0 / A)

    return kernel


def init_params(key, input_dim, hidden_dim, gnn_hidden, z_dim=8):
    """Canonical (PyTorch-like) parameter set. b_lstm corresponds to the sum
    b_ih + b_hh of torch.nn.LSTM's two bias vectors (gate order i, f, g, o)."""
    F, H, G, Z = input_dim, hidden_dim, gnn_hidden, z_dim
    shapes = {
        "w_ih": (F, 4 * H), "w_hh": (H, 4 * H), "b_lstm": (1, 4 * H),
        "w_enc": (H, H), "b_enc": (1, H),
        "w_zm": (H, Z), "b_zm": (1, Z),
        "w_phiz": (Z, H), "b_phiz": (1, H),
        # SAGEConv1: in_feats = 2H, out_feats = H (fc_pool maps in->in)
        "w_pool1": (2 * H, 2 * H), "b_pool1": (1, 2 * H),
        "w_self1": (2 * H, H), "w_neigh1": (2 * H, H), "b_neigh1": (1, H),
        # SAGEConv2: in_feats = H, out_feats = G
        "w_pool2": (H, H), "b_pool2": (1, H),
        "w_self2": (H, G), "w_neigh2": (H, G), "b_neigh2": (1, G),
    }
    params = {}
    keys = jax.random.split(key, len(shapes))
    for k, (name, shp) in zip(keys, shapes.items()):
        if name.startswith("b_"):
            params[name] = jnp.zeros(shp, jnp.float32)
        else:
            fan_in = shp[0]
            params[name] = (jax.random.normal(k, shp, jnp.float32)
                            / jnp.sqrt(jnp.float32(fan_in)))
    return params


def _prepare_weights(params, matmul_dtype):
    """Host-side weight prep: reorder LSTM gates to (i,f,o,g) and keep them
    fused (128-lane matmuls), stack each SAGE layer's self/neigh weights into
    one slab, pad the last layer's output to a multiple of 128 lanes, and cast
    matmul weights to bf16."""
    H = params["w_hh"].shape[0]
    G = params["w_self2"].shape[1]
    Gp = _round_up(G, _LANE)

    def wc(w):
        return w.astype(matmul_dtype)

    def reorder_gates(w):  # columns (i, f, g, o) -> (i, f, o, g)
        i_, f_, g_, o_ = jnp.split(w, 4, axis=1)
        return jnp.concatenate([i_, f_, o_, g_], axis=1)

    pad2 = ((0, 0), (0, Gp - G))
    weights = [
        wc(reorder_gates(params["w_ih"])),                        # [F, 4H]
        wc(reorder_gates(params["w_hh"])),                        # [H, 4H]
        reorder_gates(params["b_lstm"]).astype(jnp.float32),      # [1, 4H]
        wc(params["w_enc"]), params["b_enc"].astype(jnp.float32),
        wc(params["w_zm"]), params["b_zm"].astype(jnp.float32),
        wc(params["w_phiz"]), params["b_phiz"].astype(jnp.float32),
        wc(params["w_pool1"]), params["b_pool1"].astype(jnp.float32),
        wc(jnp.concatenate([params["w_self1"], params["w_neigh1"]], axis=0)),
        params["b_neigh1"].astype(jnp.float32),
        wc(params["w_pool2"]), params["b_pool2"].astype(jnp.float32),
        wc(jnp.concatenate([jnp.pad(params["w_self2"], pad2),
                            jnp.pad(params["w_neigh2"], pad2)], axis=0)),
        jnp.pad(params["b_neigh2"], pad2).astype(jnp.float32),
    ]
    return weights, G, Gp


def _is_multi_core_tc():
    """True only on generations with >1 TensorCore sharing the grid (v7x)."""
    try:
        kind = jax.devices()[0].device_kind.lower()
    except Exception:
        return False
    return "v7" in kind


def _choose_blocking(B, A, multi_core, max_nodes_per_step):
    """Generation-aware grid sizing: a single big block on single-TensorCore
    chips (the grid is a serial loop there), >=2 (even) blocks on v7x so both
    TensorCores get work. The batch is padded up to num_blocks * bb instead of
    shrinking per-step node count."""
    step = 2 if (multi_core and B > 1) else 1
    num_blocks = step
    while num_blocks < B and _ceil_div(B, num_blocks) * A > max_nodes_per_step:
        num_blocks += step
    bb = _ceil_div(B, num_blocks)
    return num_blocks, bb


def variational_gnn_forward(agent_obs, hideout_obs, timestep_obs, num_agents,
                            params, matmul_dtype=jnp.bfloat16,
                            max_nodes_per_step=1024):
    B, T, A, F = agent_obs.shape

    # Static-shape requirement (skip under tracing; no forced sync inside jit).
    if not isinstance(num_agents, jax.core.Tracer):
        na = jnp.asarray(num_agents)
        if na.size and not bool(jnp.all(na == A)):
            raise ValueError(
                "static Pallas kernel requires num_agents[i] == A for every i")

    weights, G, Gp = _prepare_weights(params, matmul_dtype)
    H = params["w_hh"].shape[0]

    num_blocks, bb = _choose_blocking(B, A, _is_multi_core_tc(),
                                      max_nodes_per_step)
    B_pad = num_blocks * bb
    N = bb * A

    # Cast streamed input to the matmul dtype on the host (halves the per-step
    # x DMA); f32 precision is recovered via f32 MXU accumulation.
    x = agent_obs.astype(matmul_dtype)
    if B_pad != B:
        x = jnp.pad(x, ((0, B_pad - B), (0, 0), (0, 0), (0, 0)))
    # Node-major layout: [T, num_blocks, bb*A, F]; graphs are contiguous
    # blocks of A nodes along the node axis.
    x = x.transpose(1, 0, 2, 3).reshape(T, num_blocks, N, F)

    in_specs = [pl.BlockSpec((T, None, N, F), lambda i: (0, i, 0, 0))]
    in_specs += [pl.BlockSpec(w.shape, lambda i: (0, 0)) for w in weights]

    grid_spec = pltpu.PrefetchScalarGridSpec(
        num_scalar_prefetch=0,
        grid=(num_blocks,),
        in_specs=in_specs,
        out_specs=pl.BlockSpec((None, bb, Gp), lambda i: (i, 0, 0)),
        scratch_shapes=[pltpu.VMEM((T, N, 4 * H), jnp.float32)],
    )

    gnn_out = pl.pallas_call(
        _make_vgnn_kernel(A),
        out_shape=jax.ShapeDtypeStruct((num_blocks, bb, Gp), jnp.float32),
        grid_spec=grid_spec,
        compiler_params=pltpu.CompilerParams(
            dimension_semantics=("parallel",)),
    )(x, *weights)

    graph_feat = gnn_out.reshape(B_pad, Gp)[:B, :G]                 # [B, G]
    return jnp.concatenate(
        [graph_feat,
         hideout_obs.astype(jnp.float32),
         timestep_obs.astype(jnp.float32)],
        axis=-1)


if __name__ == "__main__":
    # Small shapes consistent with the module's forward.
    B, T, A, F = 2, 8, 8, 4        # batch, seq_len, num_agents, features
    H, G, Z = 32, 32, 8            # hidden_dim, gnn_hidden, z_dim

    key = jax.random.PRNGKey(0)
    k_p, k_a, k_h, k_t = jax.random.split(key, 4)

    params = init_params(k_p, input_dim=F, hidden_dim=H, gnn_hidden=G, z_dim=Z)
    agent_obs = jax.random.normal(k_a, (B, T, A, F), jnp.float32)
    hideout_obs = jax.random.normal(k_h, (B, 2), jnp.float32)
    timestep_obs = jax.random.uniform(k_t, (B, 1), jnp.float32)
    num_agents = jnp.full((B,), A, jnp.int32)

    out = variational_gnn_forward(agent_obs, hideout_obs, timestep_obs,
                                  num_agents, params)
    out = jax.block_until_ready(out)

    expected = (B, G + hideout_obs.shape[-1] + timestep_obs.shape[-1])
    assert out.shape == expected, (out.shape, expected)
    assert bool(jnp.all(jnp.isfinite(out)))
    print("KERNEL_OK")
</pallas_src>

<mosaic_0001>
module attributes {stable_mosaic.version = 11 : i64} {
  func.func @kernel(%arg0: i32, %arg1: memref<8x1x16x4xbf16, #tpu.memory_space<vmem>>, %arg2: memref<4x128xbf16, #tpu.memory_space<vmem>>, %arg3: memref<32x128xbf16, #tpu.memory_space<vmem>>, %arg4: memref<1x128xf32, #tpu.memory_space<vmem>>, %arg5: memref<32x32xbf16, #tpu.memory_space<vmem>>, %arg6: memref<1x32xf32, #tpu.memory_space<vmem>>, %arg7: memref<32x8xbf16, #tpu.memory_space<vmem>>, %arg8: memref<1x8xf32, #tpu.memory_space<vmem>>, %arg9: memref<8x32xbf16, #tpu.memory_space<vmem>>, %arg10: memref<1x32xf32, #tpu.memory_space<vmem>>, %arg11: memref<64x64xbf16, #tpu.memory_space<vmem>>, %arg12: memref<1x64xf32, #tpu.memory_space<vmem>>, %arg13: memref<128x32xbf16, #tpu.memory_space<vmem>>, %arg14: memref<1x32xf32, #tpu.memory_space<vmem>>, %arg15: memref<32x32xbf16, #tpu.memory_space<vmem>>, %arg16: memref<1x32xf32, #tpu.memory_space<vmem>>, %arg17: memref<64x128xbf16, #tpu.memory_space<vmem>>, %arg18: memref<1x128xf32, #tpu.memory_space<vmem>>, %arg19: memref<1x2x128xf32, #tpu.memory_space<vmem>>, %arg20: memref<8x16x128xf32, #tpu.memory_space<vmem>>) attributes {dimension_semantics = [#tpu.dimension_semantics<parallel>], iteration_bounds = array<i64: 1>, scalar_prefetch = 0 : i64, scratch_operands = 1 : i64, tpu.core_type = #tpu.core_type<tc>, window_params = [{transform_indices = @transform_0, window_bounds = array<i64: 8, 1, 16, 4>}, {pipeline_mode = #tpu.pipeline_mode<synchronous>, transform_indices = @transform_1, window_bounds = array<i64: 4, 128>}, {pipeline_mode = #tpu.pipeline_mode<synchronous>, transform_indices = @transform_2, window_bounds = array<i64: 32, 128>}, {pipeline_mode = #tpu.pipeline_mode<synchronous>, transform_indices = @transform_3, window_bounds = array<i64: 1, 128>}, {pipeline_mode = #tpu.pipeline_mode<synchronous>, transform_indices = @transform_4, window_bounds = array<i64: 32, 32>}, {pipeline_mode = #tpu.pipeline_mode<synchronous>, transform_indices = @transform_5, window_bounds = array<i64: 1, 32>}, {pipeline_mode = #tpu.pipeline_mode<synchronous>, transform_indices = @transform_6, window_bounds = array<i64: 32, 8>}, {pipeline_mode = #tpu.pipeline_mode<synchronous>, transform_indices = @transform_7, window_bounds = array<i64: 1, 8>}, {pipeline_mode = #tpu.pipeline_mode<synchronous>, transform_indices = @transform_8, window_bounds = array<i64: 8, 32>}, {pipeline_mode = #tpu.pipeline_mode<synchronous>, transform_indices = @transform_9, window_bounds = array<i64: 1, 32>}, {pipeline_mode = #tpu.pipeline_mode<synchronous>, transform_indices = @transform_10, window_bounds = array<i64: 64, 64>}, {pipeline_mode = #tpu.pipeline_mode<synchronous>, transform_indices = @transform_11, window_bounds = array<i64: 1, 64>}, {pipeline_mode = #tpu.pipeline_mode<synchronous>, transform_indices = @transform_12, window_bounds = array<i64: 128, 32>}, {pipeline_mode = #tpu.pipeline_mode<synchronous>, transform_indices = @transform_13, window_bounds = array<i64: 1, 32>}, {pipeline_mode = #tpu.pipeline_mode<synchronous>, transform_indices = @transform_14, window_bounds = array<i64: 32, 32>}, {pipeline_mode = #tpu.pipeline_mode<synchronous>, transform_indices = @transform_15, window_bounds = array<i64: 1, 32>}, {pipeline_mode = #tpu.pipeline_mode<synchronous>, transform_indices = @transform_16, window_bounds = array<i64: 64, 128>}, {pipeline_mode = #tpu.pipeline_mode<synchronous>, transform_indices = @transform_17, window_bounds = array<i64: 1, 128>}, {transform_indices = @transform_18, window_bounds = array<i64: 1, 2, 128>}]} {
    %c0 = arith.constant 0 : index
    %c0_0 = arith.constant 0 : index
    %c0_1 = arith.constant 0 : index
    %c0_2 = arith.constant 0 : index
    %0 = vector.load %arg1[%c0, %c0_0, %c0_1, %c0_2] : memref<8x1x16x4xbf16, #tpu.memory_space<vmem>>, vector<8x1x16x4xbf16>
    %1 = vector.shape_cast %0 : vector<8x1x16x4xbf16> to vector<8x16x4xbf16>
    %2 = vector.shape_cast %1 : vector<8x16x4xbf16> to vector<128x4xbf16>
    %c0_3 = arith.constant 0 : index
    %c0_4 = arith.constant 0 : index
    %3 = vector.load %arg2[%c0_3, %c0_4] : memref<4x128xbf16, #tpu.memory_space<vmem>>, vector<4x128xbf16>
    %cst = arith.constant dense<0.000000e+00> : vector<128x128xf32>
    %4 = tpu.matmul %2, %3, %cst {dimension_numbers = #tpu.dot_dimension_numbers<[1], [0], [0], [1], [0, 0, 1, 1], [], []>} : vector<128x4xbf16>, vector<4x128xbf16>, vector<128x128xf32> -> vector<128x128xf32>
    %c0_5 = arith.constant 0 : index
    %c0_6 = arith.constant 0 : index
    %5 = vector.load %arg4[%c0_5, %c0_6] : memref<1x128xf32, #tpu.memory_space<vmem>>, vector<1x128xf32>
    %6 = vector.broadcast %5 : vector<1x128xf32> to vector<128x128xf32>
    %7 = arith.addf %4, %6 : vector<128x128xf32>
    %8 = vector.shape_cast %7 : vector<128x128xf32> to vector<8x16x128xf32>
    %c0_7 = arith.constant 0 : index
    %c0_8 = arith.constant 0 : index
    %c0_9 = arith.constant 0 : index
    %9 = vector.load %arg20[%c0_7, %c0_8, %c0_9] : memref<8x16x128xf32, #tpu.memory_space<vmem>>, vector<8x16x128xf32>
    tpu.vector_store %arg20[%c0_7, %c0_8, %c0_9], %8 {strides = array<i32>} : memref<8x16x128xf32, #tpu.memory_space<vmem>>, vector<8x16x128xf32>,
    %10 = tpu.iota {dimensions = array<i32: 1>} : vector<16x128xi32>
    %c96_i32 = arith.constant 96 : i32
    %11 = vector.broadcast %c96_i32 : i32 to vector<16x128xi32>
    %12 = arith.cmpi slt, %10, %11 : vector<16x128xi32>
    %c0_10 = arith.constant 0 : index
    %c0_11 = arith.constant 0 : index
    %13 = vector.load %arg3[%c0_10, %c0_11] : memref<32x128xbf16, #tpu.memory_space<vmem>>, vector<32x128xbf16>
    %cst_12 = arith.constant 0.000000e+00 : f32
    %14 = vector.broadcast %cst_12 : f32 to vector<16x32xf32>
    %cst_13 = arith.constant 0.000000e+00 : f32
    %15 = vector.broadcast %cst_13 : f32 to vector<16x32xf32>
    %c0_i32 = arith.constant 0 : i32
    %16 = arith.index_cast %c0_i32 : i32 to index
    %c0_14 = arith.constant 0 : index
    %c0_15 = arith.constant 0 : index
    %17 = vector.load %arg20[%16, %c0_14, %c0_15] : memref<8x16x128xf32, #tpu.memory_space<vmem>>, vector<1x16x128xf32>
    %18 = vector.shape_cast %17 : vector<1x16x128xf32> to vector<16x128xf32>
    %19 = arith.truncf %14 : vector<16x32xf32> to vector<16x32xbf16>
    %cst_16 = arith.constant dense<0.000000e+00> : vector<16x128xf32>
    %20 = tpu.matmul %19, %13, %cst_16 {dimension_numbers = #tpu.dot_dimension_numbers<[1], [0], [0], [1], [0, 0, 1, 1], [], []>} : vector<16x32xbf16>, vector<32x128xbf16>, vector<16x128xf32> -> vector<16x128xf32>
    %21 = arith.addf %18, %20 : vector<16x128xf32>
    %22 = arith.negf %21 : vector<16x128xf32>
    %23 = math.exp %22 : vector<16x128xf32>
    %cst_17 = arith.constant 1.000000e+00 : f32
    %24 = vector.broadcast %cst_17 : f32 to vector<16x128xf32>
    %25 = arith.addf %24, %23 : vector<16x128xf32>
    %26 = arith.divf %24, %25 : vector<16x128xf32>
    %27 = math.tanh %21 : vector<16x128xf32>
    %28 = arith.select %12, %26, %27 : vector<16x128xi1>, vector<16x128xf32>
    %29 = vector.extract_strided_slice %28 {offsets = [0, 0], sizes = [16, 32], strides = [1, 1]} : vector<16x128xf32> to vector<16x32xf32>
    %30 = vector.extract_strided_slice %28 {offsets = [0, 32], sizes = [16, 32], strides = [1, 1]} : vector<16x128xf32> to vector<16x32xf32>
    %31 = vector.extract_strided_slice %28 {offsets = [0, 64], sizes = [16, 32], strides = [1, 1]} : vector<16x128xf32> to vector<16x32xf32>
    %32 = vector.extract_strided_slice %28 {offsets = [0, 96], sizes = [16, 32], strides = [1, 1]} : vector<16x128xf32> to vector<16x32xf32>
    %33 = arith.mulf %30, %15 : vector<16x32xf32>
    %34 = arith.mulf %29, %32 : vector<16x32xf32>
    %35 = arith.addf %33, %34 : vector<16x32xf32>
    %36 = math.tanh %35 : vector<16x32xf32>
    %37 = arith.mulf %31, %36 : vector<16x32xf32>
    %c1_i32 = arith.constant 1 : i32
    %38 = arith.index_cast %c1_i32 : i32 to index
    %c0_18 = arith.constant 0 : index
    %c0_19 = arith.constant 0 : index
    %39 = vector.load %arg20[%38, %c0_18, %c0_19] : memref<8x16x128xf32, #tpu.memory_space<vmem>>, vector<1x16x128xf32>
    %40 = vector.shape_cast %39 : vector<1x16x128xf32> to vector<16x128xf32>
    %41 = arith.truncf %37 : vector<16x32xf32> to vector<16x32xbf16>
    %cst_20 = arith.constant dense<0.000000e+00> : vector<16x128xf32>
    %42 = tpu.matmul %41, %13, %cst_20 {dimension_numbers = #tpu.dot_dimension_numbers<[1], [0], [0], [1], [0, 0, 1, 1], [], []>} : vector<16x32xbf16>, vector<32x128xbf16>, vector<16x128xf32> -> vector<16x128xf32>
    %43 = arith.addf %40, %42 : vector<16x128xf32>
    %44 = arith.negf %43 : vector<16x128xf32>
    %45 = math.exp %44 : vector<16x128xf32>
    %cst_21 = arith.constant 1.000000e+00 : f32
    %46 = vector.broadcast %cst_21 : f32 to vector<16x128xf32>
    %47 = arith.addf %46, %45 : vector<16x128xf32>
    %48 = arith.divf %46, %47 : vector<16x128xf32>
    %49 = math.tanh %43 : vector<16x128xf32>
    %50 = arith.select %12, %48, %49 : vector<16x128xi1>, vector<16x128xf32>
    %51 = vector.extract_strided_slice %50 {offsets = [0, 0], sizes = [16, 32], strides = [1, 1]} : vector<16x128xf32> to vector<16x32xf32>
    %52 = vector.extract_strided_slice %50 {offsets = [0, 32], sizes = [16, 32], strides = [1, 1]} : vector<16x128xf32> to vector<16x32xf32>
    %53 = vector.extract_strided_slice %50 {offsets = [0, 64], sizes = [16, 32], strides = [1, 1]} : vector<16x128xf32> to vector<16x32xf32>
    %54 = vector.extract_strided_slice %50 {offsets = [0, 96], sizes = [16, 32], strides = [1, 1]} : vector<16x128xf32> to vector<16x32xf32>
    %55 = arith.mulf %52, %35 : vector<16x32xf32>
    %56 = arith.mulf %51, %54 : vector<16x32xf32>
    %57 = arith.addf %55, %56 : vector<16x32xf32>
    %58 = math.tanh %57 : vector<16x32xf32>
    %59 = arith.mulf %53, %58 : vector<16x32xf32>
    %c2_i32 = arith.constant 2 : i32
    %60 = arith.index_cast %c2_i32 : i32 to index
    %c0_22 = arith.constant 0 : index
    %c0_23 = arith.constant 0 : index
    %61 = vector.load %arg20[%60, %c0_22, %c0_23] : memref<8x16x128xf32, #tpu.memory_space<vmem>>, vector<1x16x128xf32>
    %62 = vector.shape_cast %61 : vector<1x16x128xf32> to vector<16x128xf32>
    %63 = arith.truncf %59 : vector<16x32xf32> to vector<16x32xbf16>
    %cst_24 = arith.constant dense<0.000000e+00> : vector<16x128xf32>
    %64 = tpu.matmul %63, %13, %cst_24 {dimension_numbers = #tpu.dot_dimension_numbers<[1], [0], [0], [1], [0, 0, 1, 1], [], []>} : vector<16x32xbf16>, vector<32x128xbf16>, vector<16x128xf32> -> vector<16x128xf32>
    %65 = arith.addf %62, %64 : vector<16x128xf32>
    %66 = arith.negf %65 : vector<16x128xf32>
    %67 = math.exp %66 : vector<16x128xf32>
    %cst_25 = arith.constant 1.000000e+00 : f32
    %68 = vector.broadcast %cst_25 : f32 to vector<16x128xf32>
    %69 = arith.addf %68, %67 : vector<16x128xf32>
    %70 = arith.divf %68, %69 : vector<16x128xf32>
    %71 = math.tanh %65 : vector<16x128xf32>
    %72 = arith.select %12, %70, %71 : vector<16x128xi1>, vector<16x128xf32>
    %73 = vector.extract_strided_slice %72 {offsets = [0, 0], sizes = [16, 32], strides = [1, 1]} : vector<16x128xf32> to vector<16x32xf32>
    %74 = vector.extract_strided_slice %72 {offsets = [0, 32], sizes = [16, 32], strides = [1, 1]} : vector<16x128xf32> to vector<16x32xf32>
    %75 = vector.extract_strided_slice %72 {offsets = [0, 64], sizes = [16, 32], strides = [1, 1]} : vector<16x128xf32> to vector<16x32xf32>
    %76 = vector.extract_strided_slice %72 {offsets = [0, 96], sizes = [16, 32], strides = [1, 1]} : vector<16x128xf32> to vector<16x32xf32>
    %77 = arith.mulf %74, %57 : vector<16x32xf32>
    %78 = arith.mulf %73, %76 : vector<16x32xf32>
    %79 = arith.addf %77, %78 : vector<16x32xf32>
    %80 = math.tanh %79 : vector<16x32xf32>
    %81 = arith.mulf %75, %80 : vector<16x32xf32>
    %c3_i32 = arith.constant 3 : i32
    %82 = arith.index_cast %c3_i32 : i32 to index
    %c0_26 = arith.constant 0 : index
    %c0_27 = arith.constant 0 : index
    %83 = vector.load %arg20[%82, %c0_26, %c0_27] : memref<8x16x128xf32, #tpu.memory_space<vmem>>, vector<1x16x128xf32>
    %84 = vector.shape_cast %83 : vector<1x16x128xf32> to vector<16x128xf32>
    %85 = arith.truncf %81 : vector<16x32xf32> to vector<16x32xbf16>
    %cst_28 = arith.constant dense<0.000000e+00> : vector<16x128xf32>
    %86 = tpu.matmul %85, %13, %cst_28 {dimension_numbers = #tpu.dot_dimension_numbers<[1], [0], [0], [1], [0, 0, 1, 1], [], []>} : vector<16x32xbf16>, vector<32x128xbf16>, vector<16x128xf32> -> vector<16x128xf32>
    %87 = arith.addf %84, %86 : vector<16x128xf32>
    %88 = arith.negf %87 : vector<16x128xf32>
    %89 = math.exp %88 : vector<16x128xf32>
    %cst_29 = arith.constant 1.000000e+00 : f32
    %90 = vector.broadcast %cst_29 : f32 to vector<16x128xf32>
    %91 = arith.addf %90, %89 : vector<16x128xf32>
    %92 = arith.divf %90, %91 : vector<16x128xf32>
    %93 = math.tanh %87 : vector<16x128xf32>
    %94 = arith.select %12, %92, %93 : vector<16x128xi1>, vector<16x128xf32>
    %95 = vector.extract_strided_slice %94 {offsets = [0, 0], sizes = [16, 32], strides = [1, 1]} : vector<16x128xf32> to vector<16x32xf32>
    %96 = vector.extract_strided_slice %94 {offsets = [0, 32], sizes = [16, 32], strides = [1, 1]} : vector<16x128xf32> to vector<16x32xf32>
    %97 = vector.extract_strided_slice %94 {offsets = [0, 64], sizes = [16, 32], strides = [1, 1]} : vector<16x128xf32> to vector<16x32xf32>
    %98 = vector.extract_strided_slice %94 {offsets = [0, 96], sizes = [16, 32], strides = [1, 1]} : vector<16x128xf32> to vector<16x32xf32>
    %99 = arith.mulf %96, %79 : vector<16x32xf32>
    %100 = arith.mulf %95, %98 : vector<16x32xf32>
    %101 = arith.addf %99, %100 : vector<16x32xf32>
    %102 = math.tanh %101 : vector<16x32xf32>
    %103 = arith.mulf %97, %102 : vector<16x32xf32>
    %c4_i32 = arith.constant 4 : i32
    %104 = arith.index_cast %c4_i32 : i32 to index
    %c0_30 = arith.constant 0 : index
    %c0_31 = arith.constant 0 : index
    %105 = vector.load %arg20[%104, %c0_30, %c0_31] : memref<8x16x128xf32, #tpu.memory_space<vmem>>, vector<1x16x128xf32>
    %106 = vector.shape_cast %105 : vector<1x16x128xf32> to vector<16x128xf32>
    %107 = arith.truncf %103 : vector<16x32xf32> to vector<16x32xbf16>
    %cst_32 = arith.constant dense<0.000000e+00> : vector<16x128xf32>
    %108 = tpu.matmul %107, %13, %cst_32 {dimension_numbers = #tpu.dot_dimension_numbers<[1], [0], [0], [1], [0, 0, 1, 1], [], []>} : vector<16x32xbf16>, vector<32x128xbf16>, vector<16x128xf32> -> vector<16x128xf32>
    %109 = arith.addf %106, %108 : vector<16x128xf32>
    %110 = arith.negf %109 : vector<16x128xf32>
    %111 = math.exp %110 : vector<16x128xf32>
    %cst_33 = arith.constant 1.000000e+00 : f32
    %112 = vector.broadcast %cst_33 : f32 to vector<16x128xf32>
    %113 = arith.addf %112, %111 : vector<16x128xf32>
    %114 = arith.divf %112, %113 : vector<16x128xf32>
    %115 = math.tanh %109 : vector<16x128xf32>
    %116 = arith.select %12, %114, %115 : vector<16x128xi1>, vector<16x128xf32>
    %117 = vector.extract_strided_slice %116 {offsets = [0, 0], sizes = [16, 32], strides = [1, 1]} : vector<16x128xf32> to vector<16x32xf32>
    %118 = vector.extract_strided_slice %116 {offsets = [0, 32], sizes = [16, 32], strides = [1, 1]} : vector<16x128xf32> to vector<16x32xf32>
    %119 = vector.extract_strided_slice %116 {offsets = [0, 64], sizes = [16, 32], strides = [1, 1]} : vector<16x128xf32> to vector<16x32xf32>
    %120 = vector.extract_strided_slice %116 {offsets = [0, 96], sizes = [16, 32], strides = [1, 1]} : vector<16x128xf32> to vector<16x32xf32>
    %121 = arith.mulf %118, %101 : vector<16x32xf32>
    %122 = arith.mulf %117, %120 : vector<16x32xf32>
    %123 = arith.addf %121, %122 : vector<16x32xf32>
    %124 = math.tanh %123 : vector<16x32xf32>
    %125 = arith.mulf %119, %124 : vector<16x32xf32>
    %c5_i32 = arith.constant 5 : i32
    %126 = arith.index_cast %c5_i32 : i32 to index
    %c0_34 = arith.constant 0 : index
    %c0_35 = arith.constant 0 : index
    %127 = vector.load %arg20[%126, %c0_34, %c0_35] : memref<8x16x128xf32, #tpu.memory_space<vmem>>, vector<1x16x128xf32>
    %128 = vector.shape_cast %127 : vector<1x16x128xf32> to vector<16x128xf32>
    %129 = arith.truncf %125 : vector<16x32xf32> to vector<16x32xbf16>
    %cst_36 = arith.constant dense<0.000000e+00> : vector<16x128xf32>
    %130 = tpu.matmul %129, %13, %cst_36 {dimension_numbers = #tpu.dot_dimension_numbers<[1], [0], [0], [1], [0, 0, 1, 1], [], []>} : vector<16x32xbf16>, vector<32x128xbf16>, vector<16x128xf32> -> vector<16x128xf32>
    %131 = arith.addf %128, %130 : vector<16x128xf32>
    %132 = arith.negf %131 : vector<16x128xf32>
    %133 = math.exp %132 : vector<16x128xf32>
    %cst_37 = arith.constant 1.000000e+00 : f32
    %134 = vector.broadcast %cst_37 : f32 to vector<16x128xf32>
    %135 = arith.addf %134, %133 : vector<16x128xf32>
    %136 = arith.divf %134, %135 : vector<16x128xf32>
    %137 = math.tanh %131 : vector<16x128xf32>
    %138 = arith.select %12, %136, %137 : vector<16x128xi1>, vector<16x128xf32>
    %139 = vector.extract_strided_slice %138 {offsets = [0, 0], sizes = [16, 32], strides = [1, 1]} : vector<16x128xf32> to vector<16x32xf32>
    %140 = vector.extract_strided_slice %138 {offsets = [0, 32], sizes = [16, 32], strides = [1, 1]} : vector<16x128xf32> to vector<16x32xf32>
    %141 = vector.extract_strided_slice %138 {offsets = [0, 64], sizes = [16, 32], strides = [1, 1]} : vector<16x128xf32> to vector<16x32xf32>
    %142 = vector.extract_strided_slice %138 {offsets = [0, 96], sizes = [16, 32], strides = [1, 1]} : vector<16x128xf32> to vector<16x32xf32>
    %143 = arith.mulf %140, %123 : vector<16x32xf32>
    %144 = arith.mulf %139, %142 : vector<16x32xf32>
    %145 = arith.addf %143, %144 : vector<16x32xf32>
    %146 = math.tanh %145 : vector<16x32xf32>
    %147 = arith.mulf %141, %146 : vector<16x32xf32>
    %c6_i32 = arith.constant 6 : i32
    %148 = arith.index_cast %c6_i32 : i32 to index
    %c0_38 = arith.constant 0 : index
    %c0_39 = arith.constant 0 : index
    %149 = vector.load %arg20[%148, %c0_38, %c0_39] : memref<8x16x128xf32, #tpu.memory_space<vmem>>, vector<1x16x128xf32>
    %150 = vector.shape_cast %149 : vector<1x16x128xf32> to vector<16x128xf32>
    %151 = arith.truncf %147 : vector<16x32xf32> to vector<16x32xbf16>
    %cst_40 = arith.constant dense<0.000000e+00> : vector<16x128xf32>
    %152 = tpu.matmul %151, %13, %cst_40 {dimension_numbers = #tpu.dot_dimension_numbers<[1], [0], [0], [1], [0, 0, 1, 1], [], []>} : vector<16x32xbf16>, vector<32x128xbf16>, vector<16x128xf32> -> vector<16x128xf32>
    %153 = arith.addf %150, %152 : vector<16x128xf32>
    %154 = arith.negf %153 : vector<16x128xf32>
    %155 = math.exp %154 : vector<16x128xf32>
    %cst_41 = arith.constant 1.000000e+00 : f32
    %156 = vector.broadcast %cst_41 : f32 to vector<16x128xf32>
    %157 = arith.addf %156, %155 : vector<16x128xf32>
    %158 = arith.divf %156, %157 : vector<16x128xf32>
    %159 = math.tanh %153 : vector<16x128xf32>
    %160 = arith.select %12, %158, %159 : vector<16x128xi1>, vector<16x128xf32>
    %161 = vector.extract_strided_slice %160 {offsets = [0, 0], sizes = [16, 32], strides = [1, 1]} : vector<16x128xf32> to vector<16x32xf32>
    %162 = vector.extract_strided_slice %160 {offsets = [0, 32], sizes = [16, 32], strides = [1, 1]} : vector<16x128xf32> to vector<16x32xf32>
    %163 = vector.extract_strided_slice %160 {offsets = [0, 64], sizes = [16, 32], strides = [1, 1]} : vector<16x128xf32> to vector<16x32xf32>
    %164 = vector.extract_strided_slice %160 {offsets = [0, 96], sizes = [16, 32], strides = [1, 1]} : vector<16x128xf32> to vector<16x32xf32>
    %165 = arith.mulf %162, %145 : vector<16x32xf32>
    %166 = arith.mulf %161, %164 : vector<16x32xf32>
    %167 = arith.addf %165, %166 : vector<16x32xf32>
    %168 = math.tanh %167 : vector<16x32xf32>
    %169 = arith.mulf %163, %168 : vector<16x32xf32>
    %c7_i32 = arith.constant 7 : i32
    %170 = arith.index_cast %c7_i32 : i32 to index
    %c0_42 = arith.constant 0 : index
    %c0_43 = arith.constant 0 : index
    %171 = vector.load %arg20[%170, %c0_42, %c0_43] : memref<8x16x128xf32, #tpu.memory_space<vmem>>, vector<1x16x128xf32>
    %172 = vector.shape_cast %171 : vector<1x16x128xf32> to vector<16x128xf32>
    %173 = arith.truncf %169 : vector<16x32xf32> to vector<16x32xbf16>
    %cst_44 = arith.constant dense<0.000000e+00> : vector<16x128xf32>
    %174 = tpu.matmul %173, %13, %cst_44 {dimension_numbers = #tpu.dot_dimension_numbers<[1], [0], [0], [1], [0, 0, 1, 1], [], []>} : vector<16x32xbf16>, vector<32x128xbf16>, vector<16x128xf32> -> vector<16x128xf32>
    %175 = arith.addf %172, %174 : vector<16x128xf32>
    %176 = arith.negf %175 : vector<16x128xf32>
    %177 = math.exp %176 : vector<16x128xf32>
    %cst_45 = arith.constant 1.000000e+00 : f32
    %178 = vector.broadcast %cst_45 : f32 to vector<16x128xf32>
    %179 = arith.addf %178, %177 : vector<16x128xf32>
    %180 = arith.divf %178, %179 : vector<16x128xf32>
    %181 = math.tanh %175 : vector<16x128xf32>
    %182 = arith.select %12, %180, %181 : vector<16x128xi1>, vector<16x128xf32>
    %183 = vector.extract_strided_slice %182 {offsets = [0, 0], sizes = [16, 32], strides = [1, 1]} : vector<16x128xf32> to vector<16x32xf32>
    %184 = vector.extract_strided_slice %182 {offsets = [0, 32], sizes = [16, 32], strides = [1, 1]} : vector<16x128xf32> to vector<16x32xf32>
    %185 = vector.extract_strided_slice %182 {offsets = [0, 64], sizes = [16, 32], strides = [1, 1]} : vector<16x128xf32> to vector<16x32xf32>
    %186 = vector.extract_strided_slice %182 {offsets = [0, 96], sizes = [16, 32], strides = [1, 1]} : vector<16x128xf32> to vector<16x32xf32>
    %187 = arith.mulf %184, %167 : vector<16x32xf32>
    %188 = arith.mulf %183, %186 : vector<16x32xf32>
    %189 = arith.addf %187, %188 : vector<16x32xf32>
    %190 = math.tanh %189 : vector<16x32xf32>
    %191 = arith.mulf %185, %190 : vector<16x32xf32>
    %c8_i32 = arith.constant 8 : i32
    %c0_46 = arith.constant 0 : index
    %c0_47 = arith.constant 0 : index
    %192 = vector.load %arg5[%c0_46, %c0_47] : memref<32x32xbf16, #tpu.memory_space<vmem>>, vector<32x32xbf16>
    %193 = arith.truncf %191 : vector<16x32xf32> to vector<16x32xbf16>
    %cst_48 = arith.constant dense<0.000000e+00> : vector<16x32xf32>
    %194 = tpu.matmul %193, %192, %cst_48 {dimension_numbers = #tpu.dot_dimension_numbers<[1], [0], [0], [1], [0, 0, 1, 1], [], []>} : vector<16x32xbf16>, vector<32x32xbf16>, vector<16x32xf32> -> vector<16x32xf32>
    %c0_49 = arith.constant 0 : index
    %c0_50 = arith.constant 0 : index
    %195 = vector.load %arg6[%c0_49, %c0_50] : memref<1x32xf32, #tpu.memory_space<vmem>>, vector<1x32xf32>
    %196 = vector.broadcast %195 : vector<1x32xf32> to vector<16x32xf32>
    %197 = arith.addf %194, %196 : vector<16x32xf32>
    %cst_51 = arith.constant 0.000000e+00 : f32
    %198 = vector.broadcast %cst_51 : f32 to vector<16x32xf32>
    %199 = arith.maximumf %197, %198 : vector<16x32xf32>
    %c0_52 = arith.constant 0 : index
    %c0_53 = arith.constant 0 : index
    %200 = vector.load %arg7[%c0_52, %c0_53] : memref<32x8xbf16, #tpu.memory_space<vmem>>, vector<32x8xbf16>
    %201 = arith.truncf %199 : vector<16x32xf32> to vector<16x32xbf16>
    %cst_54 = arith.constant dense<0.000000e+00> : vector<16x8xf32>
    %202 = tpu.matmul %201, %200, %cst_54 {dimension_numbers = #tpu.dot_dimension_numbers<[1], [0], [0], [1], [0, 0, 1, 1], [], []>} : vector<16x32xbf16>, vector<32x8xbf16>, vector<16x8xf32> -> vector<16x8xf32>
    %c0_55 = arith.constant 0 : index
    %c0_56 = arith.constant 0 : index
    %203 = vector.load %arg8[%c0_55, %c0_56] : memref<1x8xf32, #tpu.memory_space<vmem>>, vector<1x8xf32>
    %204 = vector.broadcast %203 : vector<1x8xf32> to vector<16x8xf32>
    %205 = arith.addf %202, %204 : vector<16x8xf32>
    %c0_57 = arith.constant 0 : index
    %c0_58 = arith.constant 0 : index
    %206 = vector.load %arg9[%c0_57, %c0_58] : memref<8x32xbf16, #tpu.memory_space<vmem>>, vector<8x32xbf16>
    %207 = arith.truncf %205 : vector<16x8xf32> to vector<16x8xbf16>
    %cst_59 = arith.constant dense<0.000000e+00> : vector<16x32xf32>
    %208 = tpu.matmul %207, %206, %cst_59 {dimension_numbers = #tpu.dot_dimension_numbers<[1], [0], [0], [1], [0, 0, 1, 1], [], []>} : vector<16x8xbf16>, vector<8x32xbf16>, vector<16x32xf32> -> vector<16x32xf32>
    %c0_60 = arith.constant 0 : index
    %c0_61 = arith.constant 0 : index
    %209 = vector.load %arg10[%c0_60, %c0_61] : memref<1x32xf32, #tpu.memory_space<vmem>>, vector<1x32xf32>
    %210 = vector.broadcast %209 : vector<1x32xf32> to vector<16x32xf32>
    %211 = arith.addf %208, %210 : vector<16x32xf32>
    %cst_62 = arith.constant 0.000000e+00 : f32
    %212 = vector.broadcast %cst_62 : f32 to vector<16x32xf32>
    %213 = arith.maximumf %211, %212 : vector<16x32xf32>
    %214 = tpu.concatenate %191, %213 in 1 : vector<16x32xf32>, vector<16x32xf32> -> vector<16x64xf32>
    %c0_63 = arith.constant 0 : index
    %c0_64 = arith.constant 0 : index
    %215 = vector.load %arg11[%c0_63, %c0_64] : memref<64x64xbf16, #tpu.memory_space<vmem>>, vector<64x64xbf16>
    %216 = arith.truncf %214 : vector<16x64xf32> to vector<16x64xbf16>
    %cst_65 = arith.constant dense<0.000000e+00> : vector<16x64xf32>
    %217 = tpu.matmul %216, %215, %cst_65 {dimension_numbers = #tpu.dot_dimension_numbers<[1], [0], [0], [1], [0, 0, 1, 1], [], []>} : vector<16x64xbf16>, vector<64x64xbf16>, vector<16x64xf32> -> vector<16x64xf32>
    %c0_66 = arith.constant 0 : index
    %c0_67 = arith.constant 0 : index
    %218 = vector.load %arg12[%c0_66, %c0_67] : memref<1x64xf32, #tpu.memory_space<vmem>>, vector<1x64xf32>
    %219 = vector.broadcast %218 : vector<1x64xf32> to vector<16x64xf32>
    %220 = arith.addf %217, %219 : vector<16x64xf32>
    %cst_68 = arith.constant 0.000000e+00 : f32
    %221 = vector.broadcast %cst_68 : f32 to vector<16x64xf32>
    %222 = arith.maximumf %220, %221 : vector<16x64xf32>
    %223 = vector.shape_cast %222 : vector<16x64xf32> to vector<2x8x64xf32>
    %cst_69 = arith.constant dense<0xFF800000> : vector<2x64xf32>
    %224 = vector.multi_reduction <maximumf>, %223, %cst_69 [1] : vector<2x8x64xf32> to vector<2x64xf32>
    %225 = vector.shape_cast %224 : vector<2x64xf32> to vector<2x1x64xf32>
    %226 = vector.broadcast %225 : vector<2x1x64xf32> to vector<2x8x64xf32>
    %227 = arith.cmpf oeq, %223, %226 : vector<2x8x64xf32>
    %228 = arith.extui %227 : vector<2x8x64xi1> to vector<2x8x64xi32>
    %229 = arith.sitofp %228 : vector<2x8x64xi32> to vector<2x8x64xf32>
    %cst_70 = arith.constant dense<0.000000e+00> : vector<2x64xf32>
    %230 = vector.multi_reduction <add>, %229, %cst_70 [1] : vector<2x8x64xf32> to vector<2x64xf32>
    %231 = vector.shape_cast %230 : vector<2x64xf32> to vector<2x1x64xf32>
    %cst_71 = arith.constant 0.000000e+00 : f32
    %232 = vector.broadcast %cst_71 : f32 to vector<2x8x64xf32>
    %233 = arith.select %227, %232, %223 : vector<2x8x64xi1>, vector<2x8x64xf32>
    %cst_72 = arith.constant dense<0xFF800000> : vector<2x64xf32>
    %234 = vector.multi_reduction <maximumf>, %233, %cst_72 [1] : vector<2x8x64xf32> to vector<2x64xf32>
    %235 = vector.shape_cast %234 : vector<2x64xf32> to vector<2x1x64xf32>
    %cst_73 = arith.constant 1.000000e+00 : f32
    %236 = vector.broadcast %cst_73 : f32 to vector<2x1x64xf32>
    %237 = arith.cmpf ogt, %231, %236 : vector<2x1x64xf32>
    %238 = arith.select %237, %225, %235 : vector<2x1x64xi1>, vector<2x1x64xf32>
    %239 = vector.shape_cast %238 : vector<2x1x64xf32> to vector<2x1x64xf32>
    %240 = vector.broadcast %239 : vector<2x1x64xf32> to vector<2x8x64xf32>
    %241 = vector.shape_cast %225 : vector<2x1x64xf32> to vector<2x1x64xf32>
    %242 = vector.broadcast %241 : vector<2x1x64xf32> to vector<2x8x64xf32>
    %243 = arith.select %227, %240, %242 : vector<2x8x64xi1>, vector<2x8x64xf32>
    %244 = vector.shape_cast %243 : vector<2x8x64xf32> to vector<16x64xf32>
    %c0_74 = arith.constant 0 : index
    %c0_75 = arith.constant 0 : index
    %245 = vector.load %arg13[%c0_74, %c0_75] : memref<128x32xbf16, #tpu.memory_space<vmem>>, vector<128x32xbf16>
    %246 = vector.extract_strided_slice %245 {offsets = [0, 0], sizes = [64, 32], strides = [1, 1]} : vector<128x32xbf16> to vector<64x32xbf16>
    %247 = arith.truncf %214 : vector<16x64xf32> to vector<16x64xbf16>
    %cst_76 = arith.constant dense<0.000000e+00> : vector<16x32xf32>
    %248 = tpu.matmul %247, %246, %cst_76 {dimension_numbers = #tpu.dot_dimension_numbers<[1], [0], [0], [1], [0, 0, 1, 1], [], []>} : vector<16x64xbf16>, vector<64x32xbf16>, vector<16x32xf32> -> vector<16x32xf32>
    %249 = vector.extract_strided_slice %245 {offsets = [64, 0], sizes = [64, 32], strides = [1, 1]} : vector<128x32xbf16> to vector<64x32xbf16>
    %250 = arith.truncf %244 : vector<16x64xf32> to vector<16x64xbf16>
    %cst_77 = arith.constant dense<0.000000e+00> : vector<16x32xf32>
    %251 = tpu.matmul %250, %249, %cst_77 {dimension_numbers = #tpu.dot_dimension_numbers<[1], [0], [0], [1], [0, 0, 1, 1], [], []>} : vector<16x64xbf16>, vector<64x32xbf16>, vector<16x32xf32> -> vector<16x32xf32>
    %252 = arith.addf %248, %251 : vector<16x32xf32>
    %c0_78 = arith.constant 0 : index
    %c0_79 = arith.constant 0 : index
    %253 = vector.load %arg14[%c0_78, %c0_79] : memref<1x32xf32, #tpu.memory_space<vmem>>, vector<1x32xf32>
    %254 = vector.broadcast %253 : vector<1x32xf32> to vector<16x32xf32>
    %255 = arith.addf %252, %254 : vector<16x32xf32>
    %256 = math.tanh %255 : vector<16x32xf32>
    %c0_80 = arith.constant 0 : index
    %c0_81 = arith.constant 0 : index
    %257 = vector.load %arg15[%c0_80, %c0_81] : memref<32x32xbf16, #tpu.memory_space<vmem>>, vector<32x32xbf16>
    %258 = arith.truncf %256 : vector<16x32xf32> to vector<16x32xbf16>
    %cst_82 = arith.constant dense<0.000000e+00> : vector<16x32xf32>
    %259 = tpu.matmul %258, %257, %cst_82 {dimension_numbers = #tpu.dot_dimension_numbers<[1], [0], [0], [1], [0, 0, 1, 1], [], []>} : vector<16x32xbf16>, vector<32x32xbf16>, vector<16x32xf32> -> vector<16x32xf32>
    %c0_83 = arith.constant 0 : index
    %c0_84 = arith.constant 0 : index
    %260 = vector.load %arg16[%c0_83, %c0_84] : memref<1x32xf32, #tpu.memory_space<vmem>>, vector<1x32xf32>
    %261 = vector.broadcast %260 : vector<1x32xf32> to vector<16x32xf32>
    %262 = arith.addf %259, %261 : vector<16x32xf32>
    %cst_85 = arith.constant 0.000000e+00 : f32
    %263 = vector.broadcast %cst_85 : f32 to vector<16x32xf32>
    %264 = arith.maximumf %262, %263 : vector<16x32xf32>
    %265 = vector.shape_cast %264 : vector<16x32xf32> to vector<2x8x32xf32>
    %cst_86 = arith.constant dense<0xFF800000> : vector<2x32xf32>
    %266 = vector.multi_reduction <maximumf>, %265, %cst_86 [1] : vector<2x8x32xf32> to vector<2x32xf32>
    %267 = vector.shape_cast %266 : vector<2x32xf32> to vector<2x1x32xf32>
    %268 = vector.broadcast %267 : vector<2x1x32xf32> to vector<2x8x32xf32>
    %269 = arith.cmpf oeq, %265, %268 : vector<2x8x32xf32>
    %270 = arith.extui %269 : vector<2x8x32xi1> to vector<2x8x32xi32>
    %271 = arith.sitofp %270 : vector<2x8x32xi32> to vector<2x8x32xf32>
    %cst_87 = arith.constant dense<0.000000e+00> : vector<2x32xf32>
    %272 = vector.multi_reduction <add>, %271, %cst_87 [1] : vector<2x8x32xf32> to vector<2x32xf32>
    %273 = vector.shape_cast %272 : vector<2x32xf32> to vector<2x1x32xf32>
    %cst_88 = arith.constant 0.000000e+00 : f32
    %274 = vector.broadcast %cst_88 : f32 to vector<2x8x32xf32>
    %275 = arith.select %269, %274, %265 : vector<2x8x32xi1>, vector<2x8x32xf32>
    %cst_89 = arith.constant dense<0xFF800000> : vector<2x32xf32>
    %276 = vector.multi_reduction <maximumf>, %275, %cst_89 [1] : vector<2x8x32xf32> to vector<2x32xf32>
    %277 = vector.shape_cast %276 : vector<2x32xf32> to vector<2x1x32xf32>
    %cst_90 = arith.constant 1.000000e+00 : f32
    %278 = vector.broadcast %cst_90 : f32 to vector<2x1x32xf32>
    %279 = arith.cmpf ogt, %273, %278 : vector<2x1x32xf32>
    %280 = arith.select %279, %267, %277 : vector<2x1x32xi1>, vector<2x1x32xf32>
    %281 = vector.shape_cast %280 : vector<2x1x32xf32> to vector<2x1x32xf32>
    %282 = vector.broadcast %281 : vector<2x1x32xf32> to vector<2x8x32xf32>
    %283 = vector.shape_cast %267 : vector<2x1x32xf32> to vector<2x1x32xf32>
    %284 = vector.broadcast %283 : vector<2x1x32xf32> to vector<2x8x32xf32>
    %285 = arith.select %269, %282, %284 : vector<2x8x32xi1>, vector<2x8x32xf32>
    %286 = vector.shape_cast %285 : vector<2x8x32xf32> to vector<16x32xf32>
    %c0_91 = arith.constant 0 : index
    %c0_92 = arith.constant 0 : index
    %287 = vector.load %arg17[%c0_91, %c0_92] : memref<64x128xbf16, #tpu.memory_space<vmem>>, vector<64x128xbf16>
    %288 = vector.extract_strided_slice %287 {offsets = [0, 0], sizes = [32, 128], strides = [1, 1]} : vector<64x128xbf16> to vector<32x128xbf16>
    %289 = arith.truncf %256 : vector<16x32xf32> to vector<16x32xbf16>
    %cst_93 = arith.constant dense<0.000000e+00> : vector<16x128xf32>
    %290 = tpu.matmul %289, %288, %cst_93 {dimension_numbers = #tpu.dot_dimension_numbers<[1], [0], [0], [1], [0, 0, 1, 1], [], []>} : vector<16x32xbf16>, vector<32x128xbf16>, vector<16x128xf32> -> vector<16x128xf32>
    %291 = vector.extract_strided_slice %287 {offsets = [32, 0], sizes = [32, 128], strides = [1, 1]} : vector<64x128xbf16> to vector<32x128xbf16>
    %292 = arith.truncf %286 : vector<16x32xf32> to vector<16x32xbf16>
    %cst_94 = arith.constant dense<0.000000e+00> : vector<16x128xf32>
    %293 = tpu.matmul %292, %291, %cst_94 {dimension_numbers = #tpu.dot_dimension_numbers<[1], [0], [0], [1], [0, 0, 1, 1], [], []>} : vector<16x32xbf16>, vector<32x128xbf16>, vector<16x128xf32> -> vector<16x128xf32>
    %294 = arith.addf %290, %293 : vector<16x128xf32>
    %c0_95 = arith.constant 0 : index
    %c0_96 = arith.constant 0 : index
    %295 = vector.load %arg18[%c0_95, %c0_96] : memref<1x128xf32, #tpu.memory_space<vmem>>, vector<1x128xf32>
    %296 = vector.broadcast %295 : vector<1x128xf32> to vector<16x128xf32>
    %297 = arith.addf %294, %296 : vector<16x128xf32>
    %298 = vector.shape_cast %297 : vector<16x128xf32> to vector<2x8x128xf32>
    %cst_97 = arith.constant dense<0.000000e+00> : vector<2x128xf32>
    %299 = vector.multi_reduction <add>, %298, %cst_97 [1] : vector<2x8x128xf32> to vector<2x128xf32>
    %cst_98 = arith.constant 1.250000e-01 : f32
    %300 = vector.broadcast %cst_98 : f32 to vector<2x128xf32>
    %301 = arith.mulf %299, %300 : vector<2x128xf32>
    %c0_99 = arith.constant 0 : index
    %c0_100 = arith.constant 0 : index
    %c0_101 = arith.constant 0 : index
    %302 = vector.load %arg19[%c0_99, %c0_100, %c0_101] : memref<1x2x128xf32, #tpu.memory_space<vmem>>, vector<1x2x128xf32>
    %303 = vector.shape_cast %302 : vector<1x2x128xf32> to vector<2x128xf32>
    %304 = vector.shape_cast %301 : vector<2x128xf32> to vector<1x2x128xf32>
    tpu.vector_store %arg19[%c0_99, %c0_100, %c0_101], %304 {strides = array<i32>} : memref<1x2x128xf32, #tpu.memory_space<vmem>>, vector<1x2x128xf32>,
    return
  }
  func.func @transform_0(%arg0: i32) -> (i32, i32, i32, i32) {
    %c0_i32 = arith.constant 0 : i32
    %c0_i32_0 = arith.constant 0 : i32
    %c0_i32_1 = arith.constant 0 : i32
    %c0_i32_2 = arith.constant 0 : i32
    return %c0_i32, %arg0, %c0_i32_0, %c0_i32_1 : i32, i32, i32, i32
  }
  func.func @transform_1(%arg0: i32) -> (i32, i32) {
    %c0_i32 = arith.constant 0 : i32
    %c0_i32_0 = arith.constant 0 : i32
    %c0_i32_1 = arith.constant 0 : i32
    return %c0_i32, %c0_i32_0 : i32, i32
  }
  func.func @transform_2(%arg0: i32) -> (i32, i32) {
    %c0_i32 = arith.constant 0 : i32
    %c0_i32_0 = arith.constant 0 : i32
    %c0_i32_1 = arith.constant 0 : i32
    return %c0_i32, %c0_i32_0 : i32, i32
  }
  func.func @transform_3(%arg0: i32) -> (i32, i32) {
    %c0_i32 = arith.constant 0 : i32
    %c0_i32_0 = arith.constant 0 : i32
    %c0_i32_1 = arith.constant 0 : i32
    return %c0_i32, %c0_i32_0 : i32, i32
  }
  func.func @transform_4(%arg0: i32) -> (i32, i32) {
    %c0_i32 = arith.constant 0 : i32
    %c0_i32_0 = arith.constant 0 : i32
    %c0_i32_1 = arith.constant 0 : i32
    return %c0_i32, %c0_i32_0 : i32, i32
  }
  func.func @transform_5(%arg0: i32) -> (i32, i32) {
    %c0_i32 = arith.constant 0 : i32
    %c0_i32_0 = arith.constant 0 : i32
    %c0_i32_1 = arith.constant 0 : i32
    return %c0_i32, %c0_i32_0 : i32, i32
  }
  func.func @transform_6(%arg0: i32) -> (i32, i32) {
    %c0_i32 = arith.constant 0 : i32
    %c0_i32_0 = arith.constant 0 : i32
    %c0_i32_1 = arith.constant 0 : i32
    return %c0_i32, %c0_i32_0 : i32, i32
  }
  func.func @transform_7(%arg0: i32) -> (i32, i32) {
    %c0_i32 = arith.constant 0 : i32
    %c0_i32_0 = arith.constant 0 : i32
    %c0_i32_1 = arith.constant 0 : i32
    return %c0_i32, %c0_i32_0 : i32, i32
  }
  func.func @transform_8(%arg0: i32) -> (i32, i32) {
    %c0_i32 = arith.constant 0 : i32
    %c0_i32_0 = arith.constant 0 : i32
    %c0_i32_1 = arith.constant 0 : i32
    return %c0_i32, %c0_i32_0 : i32, i32
  }
  func.func @transform_9(%arg0: i32) -> (i32, i32) {
    %c0_i32 = arith.constant 0 : i32
    %c0_i32_0 = arith.constant 0 : i32
    %c0_i32_1 = arith.constant 0 : i32
    return %c0_i32, %c0_i32_0 : i32, i32
  }
  func.func @transform_10(%arg0: i32) -> (i32, i32) {
    %c0_i32 = arith.constant 0 : i32
    %c0_i32_0 = arith.constant 0 : i32
    %c0_i32_1 = arith.constant 0 : i32
    return %c0_i32, %c0_i32_0 : i32, i32
  }
  func.func @transform_11(%arg0: i32) -> (i32, i32) {
    %c0_i32 = arith.constant 0 : i32
    %c0_i32_0 = arith.constant 0 : i32
    %c0_i32_1 = arith.constant 0 : i32
    return %c0_i32, %c0_i32_0 : i32, i32
  }
  func.func @transform_12(%arg0: i32) -> (i32, i32) {
    %c0_i32 = arith.constant 0 : i32
    %c0_i32_0 = arith.constant 0 : i32
    %c0_i32_1 = arith.constant 0 : i32
    return %c0_i32, %c0_i32_0 : i32, i32
  }
  func.func @transform_13(%arg0: i32) -> (i32, i32) {
    %c0_i32 = arith.constant 0 : i32
    %c0_i32_0 = arith.constant 0 : i32
    %c0_i32_1 = arith.constant 0 : i32
    return %c0_i32, %c0_i32_0 : i32, i32
  }
  func.func @transform_14(%arg0: i32) -> (i32, i32) {
    %c0_i32 = arith.constant 0 : i32
    %c0_i32_0 = arith.constant 0 : i32
    %c0_i32_1 = arith.constant 0 : i32
    return %c0_i32, %c0_i32_0 : i32, i32
  }
  func.func @transform_15(%arg0: i32) -> (i32, i32) {
    %c0_i32 = arith.constant 0 : i32
    %c0_i32_0 = arith.constant 0 : i32
    %c0_i32_1 = arith.constant 0 : i32
    return %c0_i32, %c0_i32_0 : i32, i32
  }
  func.func @transform_16(%arg0: i32) -> (i32, i32) {
    %c0_i32 = arith.constant 0 : i32
    %c0_i32_0 = arith.constant 0 : i32
    %c0_i32_1 = arith.constant 0 : i32
    return %c0_i32, %c0_i32_0 : i32, i32
  }
  func.func @transform_17(%arg0: i32) -> (i32, i32) {
    %c0_i32 = arith.constant 0 : i32
    %c0_i32_0 = arith.constant 0 : i32
    %c0_i32_1 = arith.constant 0 : i32
    return %c0_i32, %c0_i32_0 : i32, i32
  }
  func.func @transform_18(%arg0: i32) -> (i32, i32, i32) {
    %c0_i32 = arith.constant 0 : i32
    %c0_i32_0 = arith.constant 0 : i32
    %c0_i32_1 = arith.constant 0 : i32
    return %arg0, %c0_i32, %c0_i32_0 : i32, i32, i32
  }
}

</mosaic_0001>

<llo_original>
// kernel: tpu_custom_call.1
$region0: #{tpu_custom_call.1}
  #allocation0 [shape = 'u32[]', space=smem, size = 0x4, offset = 0x4, fixed_abs, tag = 'smem constant byte address 0x4 - core index']
  #allocation1 [shape = 'u32[144,128]{1,0:T(1,128)}', space=vmem, size = 0x12000, scoped, tag = 'internal scratch']
  #allocation2 [shape = 'f32[8,16,128]{2,1,0:T(8,128)}', space=vmem, size = 0x10000, scoped, tag = 'scratch operand']
  %s0 = inlined_call_operand.vmem [shape: bf16[8,1,16,4], index: 0, kind: input, shape index: {}]
  %s1 = inlined_call_operand.vmem [shape: bf16[4,128], index: 1, kind: input, shape index: {}]
  %s2 = inlined_call_operand.vmem [shape: bf16[32,128], index: 2, kind: input, shape index: {}]
  %s3 = inlined_call_operand.vmem [shape: f32[1,128], index: 3, kind: input, shape index: {}]
  %s4 = inlined_call_operand.vmem [shape: bf16[32,32], index: 4, kind: input, shape index: {}]
  %s5 = inlined_call_operand.vmem [shape: f32[1,32], index: 5, kind: input, shape index: {}]
  %s6 = inlined_call_operand.vmem [shape: bf16[32,8], index: 6, kind: input, shape index: {}]
  %s7 = inlined_call_operand.vmem [shape: f32[1,8], index: 7, kind: input, shape index: {}]
  %s8 = inlined_call_operand.vmem [shape: bf16[8,32], index: 8, kind: input, shape index: {}]
  %s9 = inlined_call_operand.vmem [shape: f32[1,32], index: 9, kind: input, shape index: {}]
  %s10 = inlined_call_operand.vmem [shape: bf16[64,64], index: 10, kind: input, shape index: {}]
  %s11 = inlined_call_operand.vmem [shape: f32[1,64], index: 11, kind: input, shape index: {}]
  %s12 = inlined_call_operand.vmem [shape: bf16[128,32], index: 12, kind: input, shape index: {}]
  %s13 = inlined_call_operand.vmem [shape: f32[1,32], index: 13, kind: input, shape index: {}]
  %s14 = inlined_call_operand.vmem [shape: bf16[32,32], index: 14, kind: input, shape index: {}]
  %s15 = inlined_call_operand.vmem [shape: f32[1,32], index: 15, kind: input, shape index: {}]
  %s16 = inlined_call_operand.vmem [shape: bf16[64,128], index: 16, kind: input, shape index: {}]
  %s17 = inlined_call_operand.vmem [shape: f32[1,128], index: 17, kind: input, shape index: {}]
  %s18 = inlined_call_operand.hbm [shape: f32[1,2,128], index: 18, kind: output, shape index: {}]
  %s19 = sld [smem:[#allocation0]]
  $region82: #{tpu_custom_call.1} parent=0
    _
  %s21 = ssub.s32 1, %s19
  %s22 = scalar_select 0, %s21, %s19
  $region1: #{tpu_custom_call.1} parent=0
    #allocation3 [shape = 'u8[1024]{0}', space=vmem, size = 0x400, scoped, tag = 'output window, operand 0, single buffered']
    #allocation4 [shape = 's32[1]{0}', space=sflag, size = 0x4, scoped, tag = 'scoped memory for tpu_custom_call.1']
    %23 = vsyncpa [#allocation4], 0
    // Predicated region
    $region2: #{tpu_custom_call.1} parent=1 // pred_check
      _
    $region3: #{tpu_custom_call.1} parent=1 // pred_check_branch
      %25 = sbr.rel (0) target = $region5
    $region4: #{tpu_custom_call.1} parent=1 // pred_region
      _
    $region5: #{tpu_custom_call.1} parent=1 // pred_fallthru
      _
    // Predicated region
    $region6: #{tpu_custom_call.1} parent=1 // pred_check
      _
    $region7: #{tpu_custom_call.1} parent=1 // pred_check_branch
      %27 = sbr.rel (0) target = $region9
    $region8: #{tpu_custom_call.1} parent=1 // pred_region
      _
    $region9: #{tpu_custom_call.1} parent=1 // pred_fallthru
      _
    // Predicated region
    $region10: #{tpu_custom_call.1} parent=1 // pred_check
      _
    $region11: #{tpu_custom_call.1} parent=1 // pred_check_branch
      %29 = sbr.rel (0) target = $region13
    $region12: #{tpu_custom_call.1} parent=1 // pred_region
      _
    $region13: #{tpu_custom_call.1} parent=1 // pred_fallthru
      _
    // Predicated region
    $region14: #{tpu_custom_call.1} parent=1 // pred_check
      _
    $region15: #{tpu_custom_call.1} parent=1 // pred_check_branch
      %31 = sbr.rel (0) target = $region17
    $region16: #{tpu_custom_call.1} parent=1 // pred_region
      _
    $region17: #{tpu_custom_call.1} parent=1 // pred_fallthru
      _
    // Predicated region
    $region18: #{tpu_custom_call.1} parent=1 // pred_check
      _
    $region19: #{tpu_custom_call.1} parent=1 // pred_check_branch
      %33 = sbr.rel (0) target = $region21
    $region20: #{tpu_custom_call.1} parent=1 // pred_region
      _
    $region21: #{tpu_custom_call.1} parent=1 // pred_fallthru
      _
    // Predicated region
    $region22: #{tpu_custom_call.1} parent=1 // pred_check
      _
    $region23: #{tpu_custom_call.1} parent=1 // pred_check_branch
      %35 = sbr.rel (0) target = $region25
    $region24: #{tpu_custom_call.1} parent=1 // pred_region
      _
    $region25: #{tpu_custom_call.1} parent=1 // pred_fallthru
      _
    // Predicated region
    $region26: #{tpu_custom_call.1} parent=1 // pred_check
      _
    $region27: #{tpu_custom_call.1} parent=1 // pred_check_branch
      %37 = sbr.rel (0) target = $region29
    $region28: #{tpu_custom_call.1} parent=1 // pred_region
      _
    $region29: #{tpu_custom_call.1} parent=1 // pred_fallthru
      _
    // Predicated region
    $region30: #{tpu_custom_call.1} parent=1 // pred_check
      _
    $region31: #{tpu_custom_call.1} parent=1 // pred_check_branch
      %39 = sbr.rel (0) target = $region33
    $region32: #{tpu_custom_call.1} parent=1 // pred_region
      _
    $region33: #{tpu_custom_call.1} parent=1 // pred_fallthru
      _
    // Predicated region
    $region34: #{tpu_custom_call.1} parent=1 // pred_check
      _
    $region35: #{tpu_custom_call.1} parent=1 // pred_check_branch
      %41 = sbr.rel (0) target = $region37
    $region36: #{tpu_custom_call.1} parent=1 // pred_region
      _
    $region37: #{tpu_custom_call.1} parent=1 // pred_fallthru
      _
    // Predicated region
    $region38: #{tpu_custom_call.1} parent=1 // pred_check
      _
    $region39: #{tpu_custom_call.1} parent=1 // pred_check_branch
      %43 = sbr.rel (0) target = $region41
    $region40: #{tpu_custom_call.1} parent=1 // pred_region
      _
    $region41: #{tpu_custom_call.1} parent=1 // pred_fallthru
      _
    // Predicated region
    $region42: #{tpu_custom_call.1} parent=1 // pred_check
      _
    $region43: #{tpu_custom_call.1} parent=1 // pred_check_branch
      %45 = sbr.rel (0) target = $region45
    $region44: #{tpu_custom_call.1} parent=1 // pred_region
      _
    $region45: #{tpu_custom_call.1} parent=1 // pred_fallthru
      _
    // Predicated region
    $region46: #{tpu_custom_call.1} parent=1 // pred_check
      _
    $region47: #{tpu_custom_call.1} parent=1 // pred_check_branch
      %47 = sbr.rel (0) target = $region49
    $region48: #{tpu_custom_call.1} parent=1 // pred_region
      _
    $region49: #{tpu_custom_call.1} parent=1 // pred_fallthru
      _
    // Predicated region
    $region50: #{tpu_custom_call.1} parent=1 // pred_check
      _
    $region51: #{tpu_custom_call.1} parent=1 // pred_check_branch
      %49 = sbr.rel (0) target = $region53
    $region52: #{tpu_custom_call.1} parent=1 // pred_region
      _
    $region53: #{tpu_custom_call.1} parent=1 // pred_fallthru
      _
    // Predicated region
    $region54: #{tpu_custom_call.1} parent=1 // pred_check
      _
    $region55: #{tpu_custom_call.1} parent=1 // pred_check_branch
      %51 = sbr.rel (0) target = $region57
    $region56: #{tpu_custom_call.1} parent=1 // pred_region
      _
    $region57: #{tpu_custom_call.1} parent=1 // pred_fallthru
      _
    // Predicated region
    $region58: #{tpu_custom_call.1} parent=1 // pred_check
      _
    $region59: #{tpu_custom_call.1} parent=1 // pred_check_branch
      %53 = sbr.rel (0) target = $region61
    $region60: #{tpu_custom_call.1} parent=1 // pred_region
      _
    $region61: #{tpu_custom_call.1} parent=1 // pred_fallthru
      _
    // Predicated region
    $region62: #{tpu_custom_call.1} parent=1 // pred_check
      _
    $region63: #{tpu_custom_call.1} parent=1 // pred_check_branch
      %55 = sbr.rel (0) target = $region65
    $region64: #{tpu_custom_call.1} parent=1 // pred_region
      _
    $region65: #{tpu_custom_call.1} parent=1 // pred_fallthru
      _
    // Predicated region
    $region66: #{tpu_custom_call.1} parent=1 // pred_check
      _
    $region67: #{tpu_custom_call.1} parent=1 // pred_check_branch
      %57 = sbr.rel (0) target = $region69
    $region68: #{tpu_custom_call.1} parent=1 // pred_region
      _
    $region69: #{tpu_custom_call.1} parent=1 // pred_fallthru
      _
    // Predicated region
    $region70: #{tpu_custom_call.1} parent=1 // pred_check
      _
    $region71: #{tpu_custom_call.1} parent=1 // pred_check_branch
      %59 = sbr.rel (0) target = $region73
    $region72: #{tpu_custom_call.1} parent=1 // pred_region
      _
    $region73: #{tpu_custom_call.1} parent=1 // pred_fallthru
      _
    %v61 = vld [vmem:[%s0] sm:$0xf]
    %v62 = vld [vmem:[%s0 + $0x4] sm:$0xf]
    %v63 = vld [vmem:[%s0 + $0x8] sm:$0xf]
    %v64 = vld [vmem:[%s0 + $0xc] sm:$0xf]
    %v65 = vld [vmem:[%s0 + $0x10] sm:$0xf]
    %v66 = vld [vmem:[%s0 + $0x14] sm:$0xf]
    %v67 = vld [vmem:[%s0 + $0x18] sm:$0xf]
    %v68 = vld [vmem:[%s0 + $0x1c] sm:$0xf]
    %v69 = vld [vmem:[%s0 + $0x20] sm:$0xf]
    %v70 = vld [vmem:[%s0 + $0x24] sm:$0xf]
    %v71 = vld [vmem:[%s0 + $0x28] sm:$0xf]
    %v72 = vld [vmem:[%s0 + $0x2c] sm:$0xf]
    %v73 = vld [vmem:[%s0 + $0x30] sm:$0xf]
    %v74 = vld [vmem:[%s0 + $0x34] sm:$0xf]
    %v75 = vld [vmem:[%s0 + $0x38] sm:$0xf]
    %v76 = vld [vmem:[%s0 + $0x3c] sm:$0xf]
    %v77 = vld [vmem:[%s1] sm:$0x3]
    %v78 = vld [vmem:[%s3] sm:$0x1]
    %v80 = vlaneseq
    %v81 = vshrl.u32 %v80, 7
    %v82 = vsub.s32 0, %v81
    %v83 = vrot.slane %v78, %v82
    %v101 = vunpack.c.l.b16 %v61
    %v102 = vunpack.c.l.b16 %v62
    %v103 = vunpack.c.l.b16 %v63
    %v104 = vunpack.c.l.b16 %v64
    %v105 = vunpack.c.l.b16 %v65
    %v106 = vunpack.c.l.b16 %v66
    %v107 = vunpack.c.l.b16 %v67
    %v108 = vunpack.c.l.b16 %v68
    %v109 = vunpack.c.l.b16 %v69
    %v110 = vunpack.c.l.b16 %v70
    %v111 = vunpack.c.l.b16 %v71
    %v112 = vunpack.c.l.b16 %v72
    %v113 = vunpack.c.l.b16 %v73
    %v114 = vunpack.c.l.b16 %v74
    %v115 = vunpack.c.l.b16 %v75
    %v116 = vunpack.c.l.b16 %v76
    %v117 = vpack.c.b16 %v102, %v101
    %v118 = vpack.c.b16 %v104, %v103
    %v119 = vpack.c.b16 %v106, %v105
    %v120 = vpack.c.b16 %v108, %v107
    %v121 = vpack.c.b16 %v110, %v109
    %v122 = vpack.c.b16 %v112, %v111
    %v123 = vpack.c.b16 %v114, %v113
    %v124 = vpack.c.b16 %v116, %v115
    %vm125 = vcmask 31744
    %v127 = vsel %vm125, %v117, 0
    %v130 = vsel %vm125, %v118, 0
    %v133 = vsel %vm125, %v119, 0
    %v136 = vsel %vm125, %v120, 0
    %v139 = vsel %vm125, %v121, 0
    %v142 = vsel %vm125, %v122, 0
    %v145 = vsel %vm125, %v123, 0
    %v148 = vsel %vm125, %v124, 0
    %vm150 = vcmask 1041408
    %v152 = vsel %vm150, %v77, 0
    %154 = vmatprep.subr.bf16.mxu0 0
    %155 = vmatpush1.bf16.msra.mxu0 %v152
    %156 = vmatprep.subr.bf16.mxu0 0
    %157 = vmatpush1.bf16.msra.mxu0 0
    %158 = vmatprep.subr.bf16.mxu0 0
    %159 = vmatpush1.bf16.msra.mxu0 0
    %160 = vmatprep.subr.bf16.mxu0 0
    %161 = vmatpush1.bf16.msra.mxu0 0
    %162 = vmatprep.subr.bf16.mxu0 0
    %163 = vmatpush1.bf16.msra.mxu0 0
    %164 = vmatprep.subr.bf16.mxu0 0
    %165 = vmatpush1.bf16.msra.mxu0 0
    %166 = vmatprep.subr.bf16.mxu0 0
    %167 = vmatpush1.bf16.msra.mxu0 0
    %168 = vmatprep.subr.bf16.mxu0 0
    %169 = vmatpush1.bf16.msra.mxu0 0
    %170 = vmatprep.subr.bf16.mxu0 0
    %171 = vmatpush1.bf16.msra.mxu0 0
    %172 = vmatprep.subr.bf16.mxu0 0
    %173 = vmatpush1.bf16.msra.mxu0 0
    %174 = vmatprep.subr.bf16.mxu0 0
    %175 = vmatpush1.bf16.msra.mxu0 0
    %176 = vmatprep.subr.bf16.mxu0 0
    %177 = vmatpush1.bf16.msra.mxu0 0
    %178 = vmatprep.subr.bf16.mxu0 0
    %179 = vmatpush1.bf16.msra.mxu0 0
    %180 = vmatprep.subr.bf16.mxu0 0
    %181 = vmatpush1.bf16.msra.mxu0 0
    %182 = vmatprep.subr.bf16.mxu0 0
    %183 = vmatpush1.bf16.msra.mxu0 0
    %184 = vmatprep.subr.bf16.mxu0 0
    %185 = vmatpush1.bf16.msra.mxu0 0
    %186 = vmatprep.mubr.bf16.mxu0 0
    %187 = vmatmul.mubr.bf16.gmra.mrb[0].mxu0 %v127
    %v188 = vpop.f32.mrb[0].mxu0
    %v189 = vadd.f32 %v83, %v188
    %v190 = vpop.f32.mrb[0].mxu0
    %v191 = vpop.f32.mrb[0].mxu0
    %v192 = vadd.f32 %v83, %v191
    %v193 = vpop.f32.mrb[0].mxu0
    %194 = vmatprep.mubr.bf16.mxu0 0
    %195 = vmatmul.mubr.bf16.gmra.mrb[0].mxu0 %v130
    %v196 = vpop.f32.mrb[0].mxu0
    %v197 = vadd.f32 %v83, %v196
    %v198 = vpop.f32.mrb[0].mxu0
    %v199 = vpop.f32.mrb[0].mxu0
    %v200 = vadd.f32 %v83, %v199
    %v201 = vpop.f32.mrb[0].mxu0
    %202 = vmatprep.mubr.bf16.mxu0 0
    %203 = vmatmul.mubr.bf16.gmra.mrb[0].mxu0 %v133
    %v204 = vpop.f32.mrb[0].mxu0
    %v205 = vadd.f32 %v83, %v204
    %v206 = vpop.f32.mrb[0].mxu0
    %v207 = vpop.f32.mrb[0].mxu0
    %v208 = vadd.f32 %v83, %v207
    %v209 = vpop.f32.mrb[0].mxu0
    %210 = vmatprep.mubr.bf16.mxu0 0
    %211 = vmatmul.mubr.bf16.gmra.mrb[0].mxu0 %v136
    %v212 = vpop.f32.mrb[0].mxu0
    %v213 = vadd.f32 %v83, %v212
    %v214 = vpop.f32.mrb[0].mxu0
    %v215 = vpop.f32.mrb[0].mxu0
    %v216 = vadd.f32 %v83, %v215
    %v217 = vpop.f32.mrb[0].mxu0
    %218 = vmatprep.mubr.bf16.mxu0 0
    %219 = vmatmul.mubr.bf16.gmra.mrb[0].mxu0 %v139
    %v220 = vpop.f32.mrb[0].mxu0
    %v221 = vadd.f32 %v83, %v220
    %v222 = vpop.f32.mrb[0].mxu0
    %v223 = vpop.f32.mrb[0].mxu0
    %v224 = vadd.f32 %v83, %v223
    %v225 = vpop.f32.mrb[0].mxu0
    %226 = vmatprep.mubr.bf16.mxu0 0
    %227 = vmatmul.mubr.bf16.gmra.mrb[0].mxu0 %v142
    %v228 = vpop.f32.mrb[0].mxu0
    %v229 = vadd.f32 %v83, %v228
    %v230 = vpop.f32.mrb[0].mxu0
    %v231 = vpop.f32.mrb[0].mxu0
    %v232 = vadd.f32 %v83, %v231
    %v233 = vpop.f32.mrb[0].mxu0
    %234 = vmatprep.mubr.bf16.mxu0 0
    %235 = vmatmul.mubr.bf16.gmra.mrb[0].mxu0 %v145
    %v236 = vpop.f32.mrb[0].mxu0
    %v237 = vadd.f32 %v83, %v236
    %v238 = vpop.f32.mrb[0].mxu0
    %v239 = vpop.f32.mrb[0].mxu0
    %v240 = vadd.f32 %v83, %v239
    %v241 = vpop.f32.mrb[0].mxu0
    %242 = vmatprep.mubr.bf16.mxu0 0
    %243 = vmatmul.mubr.bf16.gmra.mrb[0].mxu0 %v148
    %v244 = vpop.f32.mrb[0].mxu0
    %v245 = vadd.f32 %v83, %v244
    %v246 = vpop.f32.mrb[0].mxu0
    %v247 = vpop.f32.mrb[0].mxu0
    %v248 = vadd.f32 %v83, %v247
    %v249 = vpop.f32.mrb[0].mxu0
    %250 = vdwg.mxu0
    %251 = vst [vmem:[#allocation2] sm:$0xff] %v189
    %252 = vst [vmem:[#allocation2 + $0x8] sm:$0xff] %v192
    %253 = vst [vmem:[#allocation2 + $0x10] sm:$0xff] %v197
    %254 = vst [vmem:[#allocation2 + $0x18] sm:$0xff] %v200
    %255 = vst [vmem:[#allocation2 + $0x20] sm:$0xff] %v205
    %256 = vst [vmem:[#allocation2 + $0x28] sm:$0xff] %v208
    %257 = vst [vmem:[#allocation2 + $0x30] sm:$0xff] %v213
    %258 = vst [vmem:[#allocation2 + $0x38] sm:$0xff] %v216
    %259 = vst [vmem:[#allocation2 + $0x40] sm:$0xff] %v221
    %260 = vst [vmem:[#allocation2 + $0x48] sm:$0xff] %v224
    %261 = vst [vmem:[#allocation2 + $0x50] sm:$0xff] %v229
    %262 = vst [vmem:[#allocation2 + $0x58] sm:$0xff] %v232
    %263 = vst [vmem:[#allocation2 + $0x60] sm:$0xff] %v237
    %264 = vst [vmem:[#allocation2 + $0x68] sm:$0xff] %v240
    %265 = vst [vmem:[#allocation2 + $0x70] sm:$0xff] %v245
    %266 = vst [vmem:[#allocation2 + $0x78] sm:$0xff] %v248
    %v267 = vlaneseq
    %v268 = vand.u32 %v267, 127
    %vm269 = vcmp.lt.s32.totalorder %v268, 96
    %v270 = vld [vmem:[%s2] sm:$0xf]
    %v271 = vld [vmem:[%s2 + $0x4] sm:$0xf]
    %v272 = vld [vmem:[%s2 + $0x8] sm:$0xf]
    %v273 = vld [vmem:[%s2 + $0xc] sm:$0xf]
    %v274 = vld [vmem:[#allocation2] sm:$0xff]
    %v275 = vld [vmem:[#allocation2 + $0x8] sm:$0xff]
    %v280 = vunpack.c.l.b16 %v270
    %v281 = vunpack.c.l.b16 %v271
    %v282 = vunpack.c.l.b16 %v272
    %v283 = vunpack.c.l.b16 %v273
    %v284 = vpack.c.b16 %v281, %v280
    %v285 = vpack.c.b16 %v283, %v282
    %vm288 = vcmask 261120
    %v290 = vsel %vm288, 0, 0
    %292 = vmatprep.subr.bf16.mxu0 0
    %293 = vmatpush1.bf16.msra.mxu0 %v284
    %294 = vmatprep.subr.bf16.mxu0 0
    %295 = vmatpush1.bf16.msra.mxu0 %v285
    %296 = vmatprep.subr.bf16.mxu0 0
    %297 = vmatpush1.bf16.msra.mxu0 0
    %298 = vmatprep.subr.bf16.mxu0 0
    %299 = vmatpush1.bf16.msra.mxu0 0
    %300 = vmatprep.subr.bf16.mxu0 0
    %301 = vmatpush1.bf16.msra.mxu0 0
    %302 = vmatprep.subr.bf16.mxu0 0
    %303 = vmatpush1.bf16.msra.mxu0 0
    %304 = vmatprep.subr.bf16.mxu0 0
    %305 = vmatpush1.bf16.msra.mxu0 0
    %306 = vmatprep.subr.bf16.mxu0 0
    %307 = vmatpush1.bf16.msra.mxu0 0
    %308 = vmatprep.subr.bf16.mxu0 0
    %309 = vmatpush1.bf16.msra.mxu0 0
    %310 = vmatprep.subr.bf16.mxu0 0
    %311 = vmatpush1.bf16.msra.mxu0 0
    %312 = vmatprep.subr.bf16.mxu0 0
    %313 = vmatpush1.bf16.msra.mxu0 0
    %314 = vmatprep.subr.bf16.mxu0 0
    %315 = vmatpush1.bf16.msra.mxu0 0
    %316 = vmatprep.subr.bf16.mxu0 0
    %317 = vmatpush1.bf16.msra.mxu0 0
    %318 = vmatprep.subr.bf16.mxu0 0
    %319 = vmatpush1.bf16.msra.mxu0 0
    %320 = vmatprep.subr.bf16.mxu0 0
    %321 = vmatpush1.bf16.msra.mxu0 0
    %322 = vmatprep.subr.bf16.mxu0 0
    %323 = vmatpush1.bf16.msra.mxu0 0
    %324 = vmatprep.mubr.bf16.mxu0 0
    %325 = vmatmul.mubr.bf16.gmra.mrb[0].mxu0 %v290
    %v326 = vpop.f32.mrb[0].mxu0
    %v327 = vadd.f32 0.0, %v326
    %v328 = vpop.f32.mrb[0].mxu0
    %v329 = vpop.f32.mrb[0].mxu0
    %v330 = vadd.f32 0.0, %v329
    %v331 = vpop.f32.mrb[0].mxu0
    %332 = vdwg.mxu0
    %v333 = vadd.f32 %v274, %v327
    %v334 = vadd.f32 %v275, %v330
    %v335 = vxor.u32 %v333, 2147483648
    %v336 = vxor.u32 %v334, 2147483648
    %v337 = vmul.f32 %v335, 1.442695
    %v338 = vpow.pop %v337
    %v339 = vmul.f32 %v336, 1.442695
    %v340 = vpow.pop %v339
    %v341 = vadd.f32 %v338, 1.0
    %v342 = vadd.f32 %v340, 1.0
    %v343 = vrcp.pop %v341
    %v344 = vmul.f32 1.0, %v343
    %v345 = vrcp.pop %v342
    %v346 = vmul.f32 1.0, %v345
    %v347 = vtanh.pop %v333
    %v348 = vtanh.pop %v334
    %v349 = vsel %vm269, %v344, %v347
    %v350 = vsel %vm269, %v346, %v348
    %v351 = vmul.f32 %v349, 0.0
    %v352 = vmul.f32 %v350, 0.0
    %355 = vrot.lane.b32.xlu0 %v349, 32
    %v356 = vpop.permute.xlu0 %355
    %357 = vrot.lane.b32.xlu0 %v350, 32
    %v358 = vpop.permute.xlu0 %357
    %v361 = vmul.f32 %v349, %v356
    %v362 = vmul.f32 %v350, %v358
    %365 = vrot.lane.b32.xlu0 %v361, 32
    %v366 = vpop.permute.xlu0 %365
    %367 = vrot.lane.b32.xlu0 %v362, 32
    %v368 = vpop.permute.xlu0 %367
    %v371 = vadd.f32 %v351, %v366
    %v372 = vadd.f32 %v352, %v368
    %v373 = vtanh.pop %v371
    %v374 = vtanh.pop %v372
    %377 = vrot.lane.b32.xlu0 %v373, 32
    %v378 = vpop.permute.xlu0 %377
    %379 = vrot.lane.b32.xlu0 %v374, 32
    %v380 = vpop.permute.xlu0 %379
    %v383 = vmul.f32 %v349, %v378
    %v384 = vmul.f32 %v350, %v380
    %s385 = scalar_lea.vmem [#allocation2], 16
    %v386 = vld [vmem:[%s385] sm:$0xff]
    %v387 = vld [vmem:[%s385 + $0x8] sm:$0xff]
    %v388 = vpack.c.bf16 %v384, %v383
    %390 = vrot.lane.b32.xlu0 %v388, 64
    %v391 = vpop.permute.xlu0 %390
    %v393 = vsel %vm288, %v391, 0
    %395 = vmatprep.subr.bf16.mxu0 0
    %396 = vmatpush1.bf16.msra.mxu0 %v284
    %397 = vmatprep.subr.bf16.mxu0 0
    %398 = vmatpush1.bf16.msra.mxu0 %v285
    %399 = vmatprep.subr.bf16.mxu0 0
    %400 = vmatpush1.bf16.msra.mxu0 0
    %401 = vmatprep.subr.bf16.mxu0 0
    %402 = vmatpush1.bf16.msra.mxu0 0
    %403 = vmatprep.subr.bf16.mxu0 0
    %404 = vmatpush1.bf16.msra.mxu0 0
    %405 = vmatprep.subr.bf16.mxu0 0
    %406 = vmatpush1.bf16.msra.mxu0 0
    %407 = vmatprep.subr.bf16.mxu0 0
    %408 = vmatpush1.bf16.msra.mxu0 0
    %409 = vmatprep.subr.bf16.mxu0 0
    %410 = vmatpush1.bf16.msra.mxu0 0
    %411 = vmatprep.subr.bf16.mxu0 0
    %412 = vmatpush1.bf16.msra.mxu0 0
    %413 = vmatprep.subr.bf16.mxu0 0
    %414 = vmatpush1.bf16.msra.mxu0 0
    %415 = vmatprep.subr.bf16.mxu0 0
    %416 = vmatpush1.bf16.msra.mxu0 0
    %417 = vmatprep.subr.bf16.mxu0 0
    %418 = vmatpush1.bf16.msra.mxu0 0
    %419 = vmatprep.subr.bf16.mxu0 0
    %420 = vmatpush1.bf16.msra.mxu0 0
    %421 = vmatprep.subr.bf16.mxu0 0
    %422 = vmatpush1.bf16.msra.mxu0 0
    %423 = vmatprep.subr.bf16.mxu0 0
    %424 = vmatpush1.bf16.msra.mxu0 0
    %425 = vmatprep.subr.bf16.mxu0 0
    %426 = vmatpush1.bf16.msra.mxu0 0
    %427 = vmatprep.mubr.bf16.mxu0 0
    %428 = vmatmul.mubr.bf16.gmra.mrb[0].mxu0 %v393
    %v429 = vpop.f32.mrb[0].mxu0
    %v430 = vadd.f32 0.0, %v429
    %v431 = vpop.f32.mrb[0].mxu0
    %v432 = vpop.f32.mrb[0].mxu0
    %v433 = vadd.f32 0.0, %v432
    %v434 = vpop.f32.mrb[0].mxu0
    %435 = vdwg.mxu0
    %v436 = vadd.f32 %v386, %v430
    %v437 = vadd.f32 %v387, %v433
    %v438 = vxor.u32 %v436, 2147483648
    %v439 = vxor.u32 %v437, 2147483648
    %v440 = vmul.f32 %v438, 1.442695
    %v441 = vpow.pop %v440
    %v442 = vmul.f32 %v439, 1.442695
    %v443 = vpow.pop %v442
    %v444 = vadd.f32 %v441, 1.0
    %v445 = vadd.f32 %v443, 1.0
    %v446 = vrcp.pop %v444
    %v447 = vmul.f32 1.0, %v446
    %v448 = vrcp.pop %v445
    %v449 = vmul.f32 1.0, %v448
    %v450 = vtanh.pop %v436
    %v451 = vtanh.pop %v437
    %v452 = vsel %vm269, %v447, %v450
    %v453 = vsel %vm269, %v449, %v451
    %v454 = vmul.f32 %v452, %v371
    %v455 = vmul.f32 %v453, %v372
    %458 = vrot.lane.b32.xlu0 %v452, 32
    %v459 = vpop.permute.xlu0 %458
    %460 = vrot.lane.b32.xlu0 %v453, 32
    %v461 = vpop.permute.xlu0 %460
    %v464 = vmul.f32 %v452, %v459
    %v465 = vmul.f32 %v453, %v461
    %468 = vrot.lane.b32.xlu0 %v464, 32
    %v469 = vpop.permute.xlu0 %468
    %470 = vrot.lane.b32.xlu0 %v465, 32
    %v471 = vpop.permute.xlu0 %470
    %v474 = vadd.f32 %v454, %v469
    %v475 = vadd.f32 %v455, %v471
    %v476 = vtanh.pop %v474
    %v477 = vtanh.pop %v475
    %480 = vrot.lane.b32.xlu0 %v476, 32
    %v481 = vpop.permute.xlu0 %480
    %482 = vrot.lane.b32.xlu0 %v477, 32
    %v483 = vpop.permute.xlu0 %482
    %v486 = vmul.f32 %v452, %v481
    %v487 = vmul.f32 %v453, %v483
    %s488 = scalar_lea.vmem [#allocation2], 32
    %v489 = vld [vmem:[%s488] sm:$0xff]
    %v490 = vld [vmem:[%s488 + $0x8] sm:$0xff]
    %v491 = vpack.c.bf16 %v487, %v486
    %493 = vrot.lane.b32.xlu0 %v491, 64
    %v494 = vpop.permute.xlu0 %493
    %v496 = vsel %vm288, %v494, 0
    %498 = vmatprep.subr.bf16.mxu0 0
    %499 = vmatpush1.bf16.msra.mxu0 %v284
    %500 = vmatprep.subr.bf16.mxu0 0
    %501 = vmatpush1.bf16.msra.mxu0 %v285
    %502 = vmatprep.subr.bf16.mxu0 0
    %503 = vmatpush1.bf16.msra.mxu0 0
    %504 = vmatprep.subr.bf16.mxu0 0
    %505 = vmatpush1.bf16.msra.mxu0 0
    %506 = vmatprep.subr.bf16.mxu0 0
    %507 = vmatpush1.bf16.msra.mxu0 0
    %508 = vmatprep.subr.bf16.mxu0 0
    %509 = vmatpush1.bf16.msra.mxu0 0
    %510 = vmatprep.subr.bf16.mxu0 0
    %511 = vmatpush1.bf16.msra.mxu0 0
    %512 = vmatprep.subr.bf16.mxu0 0
    %513 = vmatpush1.bf16.msra.mxu0 0
    %514 = vmatprep.subr.bf16.mxu0 0
    %515 = vmatpush1.bf16.msra.mxu0 0
    %516 = vmatprep.subr.bf16.mxu0 0
    %517 = vmatpush1.bf16.msra.mxu0 0
    %518 = vmatprep.subr.bf16.mxu0 0
    %519 = vmatpush1.bf16.msra.mxu0 0
    %520 = vmatprep.subr.bf16.mxu0 0
    %521 = vmatpush1.bf16.msra.mxu0 0
    %522 = vmatprep.subr.bf16.mxu0 0
    %523 = vmatpush1.bf16.msra.mxu0 0
    %524 = vmatprep.subr.bf16.mxu0 0
    %525 = vmatpush1.bf16.msra.mxu0 0
    %526 = vmatprep.subr.bf16.mxu0 0
    %527 = vmatpush1.bf16.msra.mxu0 0
    %528 = vmatprep.subr.bf16.mxu0 0
    %529 = vmatpush1.bf16.msra.mxu0 0
    %530 = vmatprep.mubr.bf16.mxu0 0
    %531 = vmatmul.mubr.bf16.gmra.mrb[0].mxu0 %v496
    %v532 = vpop.f32.mrb[0].mxu0
    %v533 = vadd.f32 0.0, %v532
    %v534 = vpop.f32.mrb[0].mxu0
    %v535 = vpop.f32.mrb[0].mxu0
    %v536 = vadd.f32 0.0, %v535
    %v537 = vpop.f32.mrb[0].mxu0
    %538 = vdwg.mxu0
    %v539 = vadd.f32 %v489, %v533
    %v540 = vadd.f32 %v490, %v536
    %v541 = vxor.u32 %v539, 2147483648
    %v542 = vxor.u32 %v540, 2147483648
    %v543 = vmul.f32 %v541, 1.442695
    %v544 = vpow.pop %v543
    %v545 = vmul.f32 %v542, 1.442695
    %v546 = vpow.pop %v545
    %v547 = vadd.f32 %v544, 1.0
    %v548 = vadd.f32 %v546, 1.0
    %v549 = vrcp.pop %v547
    %v550 = vmul.f32 1.0, %v549
    %v551 = vrcp.pop %v548
    %v552 = vmul.f32 1.0, %v551
    %v553 = vtanh.pop %v539
    %v554 = vtanh.pop %v540
    %v555 = vsel %vm269, %v550, %v553
    %v556 = vsel %vm269, %v552, %v554
    %v557 = vmul.f32 %v555, %v474
    %v558 = vmul.f32 %v556, %v475
    %561 = vrot.lane.b32.xlu0 %v555, 32
    %v562 = vpop.permute.xlu0 %561
    %563 = vrot.lane.b32.xlu0 %v556, 32
    %v564 = vpop.permute.xlu0 %563
    %v567 = vmul.f32 %v555, %v562
    %v568 = vmul.f32 %v556, %v564
    %571 = vrot.lane.b32.xlu0 %v567, 32
    %v572 = vpop.permute.xlu0 %571
    %573 = vrot.lane.b32.xlu0 %v568, 32
    %v574 = vpop.permute.xlu0 %573
    %v577 = vadd.f32 %v557, %v572
    %v578 = vadd.f32 %v558, %v574
    %v579 = vtanh.pop %v577
    %v580 = vtanh.pop %v578
    %583 = vrot.lane.b32.xlu0 %v579, 32
    %v584 = vpop.permute.xlu0 %583
    %585 = vrot.lane.b32.xlu0 %v580, 32
    %v586 = vpop.permute.xlu0 %585
    %v589 = vmul.f32 %v555, %v584
    %v590 = vmul.f32 %v556, %v586
    %s591 = scalar_lea.vmem [#allocation2], 48
    %v592 = vld [vmem:[%s591] sm:$0xff]
    %v593 = vld [vmem:[%s591 + $0x8] sm:$0xff]
    %v594 = vpack.c.bf16 %v590, %v589
    %596 = vrot.lane.b32.xlu0 %v594, 64
    %v597 = vpop.permute.xlu0 %596
    %v599 = vsel %vm288, %v597, 0
    %601 = vmatprep.subr.bf16.mxu0 0
    %602 = vmatpush1.bf16.msra.mxu0 %v284
    %603 = vmatprep.subr.bf16.mxu0 0
    %604 = vmatpush1.bf16.msra.mxu0 %v285
    %605 = vmatprep.subr.bf16.mxu0 0
    %606 = vmatpush1.bf16.msra.mxu0 0
    %607 = vmatprep.subr.bf16.mxu0 0
    %608 = vmatpush1.bf16.msra.mxu0 0
    %609 = vmatprep.subr.bf16.mxu0 0
    %610 = vmatpush1.bf16.msra.mxu0 0
    %611 = vmatprep.subr.bf16.mxu0 0
    %612 = vmatpush1.bf16.msra.mxu0 0
    %613 = vmatprep.subr.bf16.mxu0 0
    %614 = vmatpush1.bf16.msra.mxu0 0
    %615 = vmatprep.subr.bf16.mxu0 0
    %616 = vmatpush1.bf16.msra.mxu0 0
    %617 = vmatprep.subr.bf16.mxu0 0
    %618 = vmatpush1.bf16.msra.mxu0 0
    %619 = vmatprep.subr.bf16.mxu0 0
    %620 = vmatpush1.bf16.msra.mxu0 0
    %621 = vmatprep.subr.bf16.mxu0 0
    %622 = vmatpush1.bf16.msra.mxu0 0
    %623 = vmatprep.subr.bf16.mxu0 0
    %624 = vmatpush1.bf16.msra.mxu0 0
    %625 = vmatprep.subr.bf16.mxu0 0
    %626 = vmatpush1.bf16.msra.mxu0 0
    %627 = vmatprep.subr.bf16.mxu0 0
    %628 = vmatpush1.bf16.msra.mxu0 0
    %629 = vmatprep.subr.bf16.mxu0 0
    %630 = vmatpush1.bf16.msra.mxu0 0
    %631 = vmatprep.subr.bf16.mxu0 0
    %632 = vmatpush1.bf16.msra.mxu0 0
    %633 = vmatprep.mubr.bf16.mxu0 0
    %634 = vmatmul.mubr.bf16.gmra.mrb[0].mxu0 %v599
    %v635 = vpop.f32.mrb[0].mxu0
    %v636 = vadd.f32 0.0, %v635
    %v637 = vpop.f32.mrb[0].mxu0
    %v638 = vpop.f32.mrb[0].mxu0
    %v639 = vadd.f32 0.0, %v638
    %v640 = vpop.f32.mrb[0].mxu0
    %641 = vdwg.mxu0
    %v642 = vadd.f32 %v592, %v636
    %v643 = vadd.f32 %v593, %v639
    %v644 = vxor.u32 %v642, 2147483648
    %v645 = vxor.u32 %v643, 2147483648
    %v646 = vmul.f32 %v644, 1.442695
    %v647 = vpow.pop %v646
    %v648 = vmul.f32 %v645, 1.442695
    %v649 = vpow.pop %v648
    %v650 = vadd.f32 %v647, 1.0
    %v651 = vadd.f32 %v649, 1.0
    %v652 = vrcp.pop %v650
    %v653 = vmul.f32 1.0, %v652
    %v654 = vrcp.pop %v651
    %v655 = vmul.f32 1.0, %v654
    %v656 = vtanh.pop %v642
    %v657 = vtanh.pop %v643
    %v658 = vsel %vm269, %v653, %v656
    %v659 = vsel %vm269, %v655, %v657
    %v660 = vmul.f32 %v658, %v577
    %v661 = vmul.f32 %v659, %v578
    %664 = vrot.lane.b32.xlu0 %v658, 32
    %v665 = vpop.permute.xlu0 %664
    %666 = vrot.lane.b32.xlu0 %v659, 32
    %v667 = vpop.permute.xlu0 %666
    %v670 = vmul.f32 %v658, %v665
    %v671 = vmul.f32 %v659, %v667
    %674 = vrot.lane.b32.xlu0 %v670, 32
    %v675 = vpop.permute.xlu0 %674
    %676 = vrot.lane.b32.xlu0 %v671, 32
    %v677 = vpop.permute.xlu0 %676
    %v680 = vadd.f32 %v660, %v675
    %v681 = vadd.f32 %v661, %v677
    %v682 = vtanh.pop %v680
    %v683 = vtanh.pop %v681
    %686 = vrot.lane.b32.xlu0 %v682, 32
    %v687 = vpop.permute.xlu0 %686
    %688 = vrot.lane.b32.xlu0 %v683, 32
    %v689 = vpop.permute.xlu0 %688
    %v692 = vmul.f32 %v658, %v687
    %v693 = vmul.f32 %v659, %v689
    %s694 = scalar_lea.vmem [#allocation2], 64
    %v695 = vld [vmem:[%s694] sm:$0xff]
    %v696 = vld [vmem:[%s694 + $0x8] sm:$0xff]
    %v697 = vpack.c.bf16 %v693, %v692
    %699 = vrot.lane.b32.xlu0 %v697, 64
    %v700 = vpop.permute.xlu0 %699
    %v702 = vsel %vm288, %v700, 0
    %704 = vmatprep.subr.bf16.mxu0 0
    %705 = vmatpush1.bf16.msra.mxu0 %v284
    %706 = vmatprep.subr.bf16.mxu0 0
    %707 = vmatpush1.bf16.msra.mxu0 %v285
    %708 = vmatprep.subr.bf16.mxu0 0
    %709 = vmatpush1.bf16.msra.mxu0 0
    %710 = vmatprep.subr.bf16.mxu0 0
    %711 = vmatpush1.bf16.msra.mxu0 0
    %712 = vmatprep.subr.bf16.mxu0 0
    %713 = vmatpush1.bf16.msra.mxu0 0
    %714 = vmatprep.subr.bf16.mxu0 0
    %715 = vmatpush1.bf16.msra.mxu0 0
    %716 = vmatprep.subr.bf16.mxu0 0
    %717 = vmatpush1.bf16.msra.mxu0 0
    %718 = vmatprep.subr.bf16.mxu0 0
    %719 = vmatpush1.bf16.msra.mxu0 0
    %720 = vmatprep.subr.bf16.mxu0 0
    %721 = vmatpush1.bf16.msra.mxu0 0
    %722 = vmatprep.subr.bf16.mxu0 0
    %723 = vmatpush1.bf16.msra.mxu0 0
    %724 = vmatprep.subr.bf16.mxu0 0
    %725 = vmatpush1.bf16.msra.mxu0 0
    %726 = vmatprep.subr.bf16.mxu0 0
    %727 = vmatpush1.bf16.msra.mxu0 0
    %728 = vmatprep.subr.bf16.mxu0 0
    %729 = vmatpush1.bf16.msra.mxu0 0
    %730 = vmatprep.subr.bf16.mxu0 0
    %731 = vmatpush1.bf16.msra.mxu0 0
    %732 = vmatprep.subr.bf16.mxu0 0
    %733 = vmatpush1.bf16.msra.mxu0 0
    %734 = vmatprep.subr.bf16.mxu0 0
    %735 = vmatpush1.bf16.msra.mxu0 0
    %736 = vmatprep.mubr.bf16.mxu0 0
    %737 = vmatmul.mubr.bf16.gmra.mrb[0].mxu0 %v702
    %v738 = vpop.f32.mrb[0].mxu0
    %v739 = vadd.f32 0.0, %v738
    %v740 = vpop.f32.mrb[0].mxu0
    %v741 = vpop.f32.mrb[0].mxu0
    %v742 = vadd.f32 0.0, %v741
    %v743 = vpop.f32.mrb[0].mxu0
    %744 = vdwg.mxu0
    %v745 = vadd.f32 %v695, %v739
    %v746 = vadd.f32 %v696, %v742
    %v747 = vxor.u32 %v745, 2147483648
    %v748 = vxor.u32 %v746, 2147483648
    %v749 = vmul.f32 %v747, 1.442695
    %v750 = vpow.pop %v749
    %v751 = vmul.f32 %v748, 1.442695
    %v752 = vpow.pop %v751
    %v753 = vadd.f32 %v750, 1.0
    %v754 = vadd.f32 %v752, 1.0
    %v755 = vrcp.pop %v753
    %v756 = vmul.f32 1.0, %v755
    %v757 = vrcp.pop %v754
    %v758 = vmul.f32 1.0, %v757
    %v759 = vtanh.pop %v745
    %v760 = vtanh.pop %v746
    %v761 = vsel %vm269, %v756, %v759
    %v762 = vsel %vm269, %v758, %v760
    %v763 = vmul.f32 %v761, %v680
    %v764 = vmul.f32 %v762, %v681
    %767 = vrot.lane.b32.xlu0 %v761, 32
    %v768 = vpop.permute.xlu0 %767
    %769 = vrot.lane.b32.xlu0 %v762, 32
    %v770 = vpop.permute.xlu0 %769
    %v773 = vmul.f32 %v761, %v768
    %v774 = vmul.f32 %v762, %v770
    %777 = vrot.lane.b32.xlu0 %v773, 32
    %v778 = vpop.permute.xlu0 %777
    %779 = vrot.lane.b32.xlu0 %v774, 32
    %v780 = vpop.permute.xlu0 %779
    %v783 = vadd.f32 %v763, %v778
    %v784 = vadd.f32 %v764, %v780
    %v785 = vtanh.pop %v783
    %v786 = vtanh.pop %v784
    %789 = vrot.lane.b32.xlu0 %v785, 32
    %v790 = vpop.permute.xlu0 %789
    %791 = vrot.lane.b32.xlu0 %v786, 32
    %v792 = vpop.permute.xlu0 %791
    %v795 = vmul.f32 %v761, %v790
    %v796 = vmul.f32 %v762, %v792
    %s797 = scalar_lea.vmem [#allocation2], 80
    %v798 = vld [vmem:[%s797] sm:$0xff]
    %v799 = vld [vmem:[%s797 + $0x8] sm:$0xff]
    %v800 = vpack.c.bf16 %v796, %v795
    %802 = vrot.lane.b32.xlu0 %v800, 64
    %v803 = vpop.permute.xlu0 %802
    %v805 = vsel %vm288, %v803, 0
    %807 = vmatprep.subr.bf16.mxu0 0
    %808 = vmatpush1.bf16.msra.mxu0 %v284
    %809 = vmatprep.subr.bf16.mxu0 0
    %810 = vmatpush1.bf16.msra.mxu0 %v285
    %811 = vmatprep.subr.bf16.mxu0 0
    %812 = vmatpush1.bf16.msra.mxu0 0
    %813 = vmatprep.subr.bf16.mxu0 0
    %814 = vmatpush1.bf16.msra.mxu0 0
    %815 = vmatprep.subr.bf16.mxu0 0
    %816 = vmatpush1.bf16.msra.mxu0 0
    %817 = vmatprep.subr.bf16.mxu0 0
    %818 = vmatpush1.bf16.msra.mxu0 0
    %819 = vmatprep.subr.bf16.mxu0 0
    %820 = vmatpush1.bf16.msra.mxu0 0
    %821 = vmatprep.subr.bf16.mxu0 0
    %822 = vmatpush1.bf16.msra.mxu0 0
    %823 = vmatprep.subr.bf16.mxu0 0
    %824 = vmatpush1.bf16.msra.mxu0 0
    %825 = vmatprep.subr.bf16.mxu0 0
    %826 = vmatpush1.bf16.msra.mxu0 0
    %827 = vmatprep.subr.bf16.mxu0 0
    %828 = vmatpush1.bf16.msra.mxu0 0
    %829 = vmatprep.subr.bf16.mxu0 0
    %830 = vmatpush1.bf16.msra.mxu0 0
    %831 = vmatprep.subr.bf16.mxu0 0
    %832 = vmatpush1.bf16.msra.mxu0 0
    %833 = vmatprep.subr.bf16.mxu0 0
    %834 = vmatpush1.bf16.msra.mxu0 0
    %835 = vmatprep.subr.bf16.mxu0 0
    %836 = vmatpush1.bf16.msra.mxu0 0
    %837 = vmatprep.subr.bf16.mxu0 0
    %838 = vmatpush1.bf16.msra.mxu0 0
    %839 = vmatprep.mubr.bf16.mxu0 0
    %840 = vmatmul.mubr.bf16.gmra.mrb[0].mxu0 %v805
    %v841 = vpop.f32.mrb[0].mxu0
    %v842 = vadd.f32 0.0, %v841
    %v843 = vpop.f32.mrb[0].mxu0
    %v844 = vpop.f32.mrb[0].mxu0
    %v845 = vadd.f32 0.0, %v844
    %v846 = vpop.f32.mrb[0].mxu0
    %847 = vdwg.mxu0
    %v848 = vadd.f32 %v798, %v842
    %v849 = vadd.f32 %v799, %v845
    %v850 = vxor.u32 %v848, 2147483648
    %v851 = vxor.u32 %v849, 2147483648
    %v852 = vmul.f32 %v850, 1.442695
    %v853 = vpow.pop %v852
    %v854 = vmul.f32 %v851, 1.442695
    %v855 = vpow.pop %v854
    %v856 = vadd.f32 %v853, 1.0
    %v857 = vadd.f32 %v855, 1.0
    %v858 = vrcp.pop %v856
    %v859 = vmul.f32 1.0, %v858
    %v860 = vrcp.pop %v857
    %v861 = vmul.f32 1.0, %v860
    %v862 = vtanh.pop %v848
    %v863 = vtanh.pop %v849
    %v864 = vsel %vm269, %v859, %v862
    %v865 = vsel %vm269, %v861, %v863
    %v866 = vmul.f32 %v864, %v783
    %v867 = vmul.f32 %v865, %v784
    %870 = vrot.lane.b32.xlu0 %v864, 32
    %v871 = vpop.permute.xlu0 %870
    %872 = vrot.lane.b32.xlu0 %v865, 32
    %v873 = vpop.permute.xlu0 %872
    %v876 = vmul.f32 %v864, %v871
    %v877 = vmul.f32 %v865, %v873
    %880 = vrot.lane.b32.xlu0 %v876, 32
    %v881 = vpop.permute.xlu0 %880
    %882 = vrot.lane.b32.xlu0 %v877, 32
    %v883 = vpop.permute.xlu0 %882
    %v886 = vadd.f32 %v866, %v881
    %v887 = vadd.f32 %v867, %v883
    %v888 = vtanh.pop %v886
    %v889 = vtanh.pop %v887
    %892 = vrot.lane.b32.xlu0 %v888, 32
    %v893 = vpop.permute.xlu0 %892
    %894 = vrot.lane.b32.xlu0 %v889, 32
    %v895 = vpop.permute.xlu0 %894
    %v898 = vmul.f32 %v864, %v893
    %v899 = vmul.f32 %v865, %v895
    %s900 = scalar_lea.vmem [#allocation2], 96
    %v901 = vld [vmem:[%s900] sm:$0xff]
    %v902 = vld [vmem:[%s900 + $0x8] sm:$0xff]
    %v903 = vpack.c.bf16 %v899, %v898
    %905 = vrot.lane.b32.xlu0 %v903, 64
    %v906 = vpop.permute.xlu0 %905
    %v908 = vsel %vm288, %v906, 0
    %910 = vmatprep.subr.bf16.mxu0 0
    %911 = vmatpush1.bf16.msra.mxu0 %v284
    %912 = vmatprep.subr.bf16.mxu0 0
    %913 = vmatpush1.bf16.msra.mxu0 %v285
    %914 = vmatprep.subr.bf16.mxu0 0
    %915 = vmatpush1.bf16.msra.mxu0 0
    %916 = vmatprep.subr.bf16.mxu0 0
    %917 = vmatpush1.bf16.msra.mxu0 0
    %918 = vmatprep.subr.bf16.mxu0 0
    %919 = vmatpush1.bf16.msra.mxu0 0
    %920 = vmatprep.subr.bf16.mxu0 0
    %921 = vmatpush1.bf16.msra.mxu0 0
    %922 = vmatprep.subr.bf16.mxu0 0
    %923 = vmatpush1.bf16.msra.mxu0 0
    %924 = vmatprep.subr.bf16.mxu0 0
    %925 = vmatpush1.bf16.msra.mxu0 0
    %926 = vmatprep.subr.bf16.mxu0 0
    %927 = vmatpush1.bf16.msra.mxu0 0
    %928 = vmatprep.subr.bf16.mxu0 0
    %929 = vmatpush1.bf16.msra.mxu0 0
    %930 = vmatprep.subr.bf16.mxu0 0
    %931 = vmatpush1.bf16.msra.mxu0 0
    %932 = vmatprep.subr.bf16.mxu0 0
    %933 = vmatpush1.bf16.msra.mxu0 0
    %934 = vmatprep.subr.bf16.mxu0 0
    %935 = vmatpush1.bf16.msra.mxu0 0
    %936 = vmatprep.subr.bf16.mxu0 0
    %937 = vmatpush1.bf16.msra.mxu0 0
    %938 = vmatprep.subr.bf16.mxu0 0
    %939 = vmatpush1.bf16.msra.mxu0 0
    %940 = vmatprep.subr.bf16.mxu0 0
    %941 = vmatpush1.bf16.msra.mxu0 0
    %942 = vmatprep.mubr.bf16.mxu0 0
    %943 = vmatmul.mubr.bf16.gmra.mrb[0].mxu0 %v908
    %v944 = vpop.f32.mrb[0].mxu0
    %v945 = vadd.f32 0.0, %v944
    %v946 = vpop.f32.mrb[0].mxu0
    %v947 = vpop.f32.mrb[0].mxu0
    %v948 = vadd.f32 0.0, %v947
    %v949 = vpop.f32.mrb[0].mxu0
    %950 = vdwg.mxu0
    %v951 = vadd.f32 %v901, %v945
    %v952 = vadd.f32 %v902, %v948
    %v953 = vxor.u32 %v951, 2147483648
    %v954 = vxor.u32 %v952, 2147483648
    %v955 = vmul.f32 %v953, 1.442695
    %v956 = vpow.pop %v955
    %v957 = vmul.f32 %v954, 1.442695
    %v958 = vpow.pop %v957
    %v959 = vadd.f32 %v956, 1.0
    %v960 = vadd.f32 %v958, 1.0
    %v961 = vrcp.pop %v959
    %v962 = vmul.f32 1.0, %v961
    %v963 = vrcp.pop %v960
    %v964 = vmul.f32 1.0, %v963
    %v965 = vtanh.pop %v951
    %v966 = vtanh.pop %v952
    %v967 = vsel %vm269, %v962, %v965
    %v968 = vsel %vm269, %v964, %v966
    %v969 = vmul.f32 %v967, %v886
    %v970 = vmul.f32 %v968, %v887
    %973 = vrot.lane.b32.xlu0 %v967, 32
    %v974 = vpop.permute.xlu0 %973
    %975 = vrot.lane.b32.xlu0 %v968, 32
    %v976 = vpop.permute.xlu0 %975
    %v979 = vmul.f32 %v967, %v974
    %v980 = vmul.f32 %v968, %v976
    %983 = vrot.lane.b32.xlu0 %v979, 32
    %v984 = vpop.permute.xlu0 %983
    %985 = vrot.lane.b32.xlu0 %v980, 32
    %v986 = vpop.permute.xlu0 %985
    %v989 = vadd.f32 %v969, %v984
    %v990 = vadd.f32 %v970, %v986
    %v991 = vtanh.pop %v989
    %v992 = vtanh.pop %v990
    %995 = vrot.lane.b32.xlu0 %v991, 32
    %v996 = vpop.permute.xlu0 %995
    %997 = vrot.lane.b32.xlu0 %v992, 32
    %v998 = vpop.permute.xlu0 %997
    %v1001 = vmul.f32 %v967, %v996
    %v1002 = vmul.f32 %v968, %v998
    %s1003 = scalar_lea.vmem [#allocation2], 112
    %v1004 = vld [vmem:[%s1003] sm:$0xff]
    %v1005 = vld [vmem:[%s1003 + $0x8] sm:$0xff]
    %v1006 = vpack.c.bf16 %v1002, %v1001
    %1008 = vrot.lane.b32.xlu0 %v1006, 64
    %v1009 = vpop.permute.xlu0 %1008
    %v1011 = vsel %vm288, %v1009, 0
    %1013 = vmatprep.subr.bf16.mxu0 0
    %1014 = vmatpush1.bf16.msra.mxu0 %v284
    %1015 = vmatprep.subr.bf16.mxu0 0
    %1016 = vmatpush1.bf16.msra.mxu0 %v285
    %1017 = vmatprep.subr.bf16.mxu0 0
    %1018 = vmatpush1.bf16.msra.mxu0 0
    %1019 = vmatprep.subr.bf16.mxu0 0
    %1020 = vmatpush1.bf16.msra.mxu0 0
    %1021 = vmatprep.subr.bf16.mxu0 0
    %1022 = vmatpush1.bf16.msra.mxu0 0
    %1023 = vmatprep.subr.bf16.mxu0 0
    %1024 = vmatpush1.bf16.msra.mxu0 0
    %1025 = vmatprep.subr.bf16.mxu0 0
    %1026 = vmatpush1.bf16.msra.mxu0 0
    %1027 = vmatprep.subr.bf16.mxu0 0
    %1028 = vmatpush1.bf16.msra.mxu0 0
    %1029 = vmatprep.subr.bf16.mxu0 0
    %1030 = vmatpush1.bf16.msra.mxu0 0
    %1031 = vmatprep.subr.bf16.mxu0 0
    %1032 = vmatpush1.bf16.msra.mxu0 0
    %1033 = vmatprep.subr.bf16.mxu0 0
    %1034 = vmatpush1.bf16.msra.mxu0 0
    %1035 = vmatprep.subr.bf16.mxu0 0
    %1036 = vmatpush1.bf16.msra.mxu0 0
    %1037 = vmatprep.subr.bf16.mxu0 0
    %1038 = vmatpush1.bf16.msra.mxu0 0
    %1039 = vmatprep.subr.bf16.mxu0 0
    %1040 = vmatpush1.bf16.msra.mxu0 0
    %1041 = vmatprep.subr.bf16.mxu0 0
    %1042 = vmatpush1.bf16.msra.mxu0 0
    %1043 = vmatprep.subr.bf16.mxu0 0
    %1044 = vmatpush1.bf16.msra.mxu0 0
    %1045 = vmatprep.mubr.bf16.mxu0 0
    %1046 = vmatmul.mubr.bf16.gmra.mrb[0].mxu0 %v1011
    %v1047 = vpop.f32.mrb[0].mxu0
    %v1048 = vadd.f32 0.0, %v1047
    %v1049 = vpop.f32.mrb[0].mxu0
    %v1050 = vpop.f32.mrb[0].mxu0
    %v1051 = vadd.f32 0.0, %v1050
    %v1052 = vpop.f32.mrb[0].mxu0
    %1053 = vdwg.mxu0
    %v1054 = vadd.f32 %v1004, %v1048
    %v1055 = vadd.f32 %v1005, %v1051
    %v1056 = vxor.u32 %v1054, 2147483648
    %v1057 = vxor.u32 %v1055, 2147483648
    %v1058 = vmul.f32 %v1056, 1.442695
    %v1059 = vpow.pop %v1058
    %v1060 = vmul.f32 %v1057, 1.442695
    %v1061 = vpow.pop %v1060
    %v1062 = vadd.f32 %v1059, 1.0
    %v1063 = vadd.f32 %v1061, 1.0
    %v1064 = vrcp.pop %v1062
    %v1065 = vmul.f32 1.0, %v1064
    %v1066 = vrcp.pop %v1063
    %v1067 = vmul.f32 1.0, %v1066
    %v1068 = vtanh.pop %v1054
    %v1069 = vtanh.pop %v1055
    %v1070 = vsel %vm269, %v1065, %v1068
    %v1071 = vsel %vm269, %v1067, %v1069
    %v1072 = vmul.f32 %v1070, %v989
    %v1073 = vmul.f32 %v1071, %v990
    %1076 = vrot.lane.b32.xlu0 %v1070, 32
    %v1077 = vpop.permute.xlu0 %1076
    %1078 = vrot.lane.b32.xlu0 %v1071, 32
    %v1079 = vpop.permute.xlu0 %1078
    %v1082 = vmul.f32 %v1070, %v1077
    %v1083 = vmul.f32 %v1071, %v1079
    %1086 = vrot.lane.b32.xlu0 %v1082, 32
    %v1087 = vpop.permute.xlu0 %1086
    %1088 = vrot.lane.b32.xlu0 %v1083, 32
    %v1089 = vpop.permute.xlu0 %1088
    %v1092 = vadd.f32 %v1072, %v1087
    %v1093 = vadd.f32 %v1073, %v1089
    %v1094 = vtanh.pop %v1092
    %v1095 = vtanh.pop %v1093
    %1098 = vrot.lane.b32.xlu0 %v1094, 32
    %v1099 = vpop.permute.xlu0 %1098
    %1100 = vrot.lane.b32.xlu0 %v1095, 32
    %v1101 = vpop.permute.xlu0 %1100
    %v1104 = vmul.f32 %v1070, %v1099
    %v1105 = vmul.f32 %v1071, %v1101
    %v1106 = vld [vmem:[%s4] sm:$0xf]
    %v1107 = vld [vmem:[%s4 + $0x4] sm:$0xf]
    %v1108 = vld [vmem:[%s4 + $0x8] sm:$0xf]
    %v1109 = vld [vmem:[%s4 + $0xc] sm:$0xf]
    %v1110 = vpack.c.bf16 %v1105, %v1104
    %v1111 = vld [vmem:[%s5] sm:$0x1]
    %v1113 = vlaneseq
    %v1114 = vshrl.u32 %v1113, 7
    %v1115 = vsub.s32 0, %v1114
    %v1116 = vrot.slane %v1111, %v1115
    %1119 = vrot.lane.b32.xlu0 %v1110, 64
    %v1120 = vpop.permute.xlu0 %1119
    %v1125 = vunpack.c.l.b16 %v1106
    %v1126 = vunpack.c.l.b16 %v1107
    %v1127 = vunpack.c.l.b16 %v1108
    %v1128 = vunpack.c.l.b16 %v1109
    %v1129 = vpack.c.b16 %v1126, %v1125
    %v1130 = vpack.c.b16 %v1128, %v1127
    %v1134 = vsel %vm288, %v1120, 0
    %1136 = vmatprep.subr.bf16.mxu0 0
    %1137 = vmatpush1.bf16.msra.mxu0 %v1129
    %1138 = vmatprep.subr.bf16.mxu0 0
    %1139 = vmatpush1.bf16.msra.mxu0 %v1130
    %1140 = vmatprep.subr.bf16.mxu0 0
    %1141 = vmatpush1.bf16.msra.mxu0 0
    %1142 = vmatprep.subr.bf16.mxu0 0
    %1143 = vmatpush1.bf16.msra.mxu0 0
    %1144 = vmatprep.subr.bf16.mxu0 0
    %1145 = vmatpush1.bf16.msra.mxu0 0
    %1146 = vmatprep.subr.bf16.mxu0 0
    %1147 = vmatpush1.bf16.msra.mxu0 0
    %1148 = vmatprep.subr.bf16.mxu0 0
    %1149 = vmatpush1.bf16.msra.mxu0 0
    %1150 = vmatprep.subr.bf16.mxu0 0
    %1151 = vmatpush1.bf16.msra.mxu0 0
    %1152 = vmatprep.subr.bf16.mxu0 0
    %1153 = vmatpush1.bf16.msra.mxu0 0
    %1154 = vmatprep.subr.bf16.mxu0 0
    %1155 = vmatpush1.bf16.msra.mxu0 0
    %1156 = vmatprep.subr.bf16.mxu0 0
    %1157 = vmatpush1.bf16.msra.mxu0 0
    %1158 = vmatprep.subr.bf16.mxu0 0
    %1159 = vmatpush1.bf16.msra.mxu0 0
    %1160 = vmatprep.subr.bf16.mxu0 0
    %1161 = vmatpush1.bf16.msra.mxu0 0
    %1162 = vmatprep.subr.bf16.mxu0 0
    %1163 = vmatpush1.bf16.msra.mxu0 0
    %1164 = vmatprep.subr.bf16.mxu0 0
    %1165 = vmatpush1.bf16.msra.mxu0 0
    %1166 = vmatprep.subr.bf16.mxu0 0
    %1167 = vmatpush1.bf16.msra.mxu0 0
    %1168 = vmatprep.mubr.bf16.mxu0 0
    %1169 = vmatmul.mubr.bf16.gmra.mrb[0].mxu0 %v1134
    %v1170 = vpop.f32.mrb[0].mxu0
    %v1171 = vadd.f32 %v1116, %v1170
    %v1172 = vpop.f32.mrb[0].mxu0
    %v1173 = vpop.f32.mrb[0].mxu0
    %v1174 = vadd.f32 %v1116, %v1173
    %v1175 = vpop.f32.mrb[0].mxu0
    %1176 = vdwg.mxu0
    %v1177 = vmax.f32 %v1171, 0.0
    %v1178 = vmax.f32 %v1174, 0.0
    %v1179 = vld [vmem:[%s6] sm:$0xf]
    %v1180 = vld [vmem:[%s6 + $0x4] sm:$0xf]
    %v1181 = vld [vmem:[%s6 + $0x8] sm:$0xf]
    %v1182 = vld [vmem:[%s6 + $0xc] sm:$0xf]
    %v1183 = vpack.c.bf16 %v1178, %v1177
    %v1184 = vld [vmem:[%s7] sm:$0x1]
    %v1186 = vlaneseq
    %v1187 = vshrl.u32 %v1186, 7
    %v1188 = vsub.s32 0, %v1187
    %v1189 = vrot.slane %v1184, %v1188
    %v1195 = vunpack.c.l.b16 %v1179
    %v1196 = vunpack.c.l.b16 %v1180
    %v1197 = vunpack.c.l.b16 %v1181
    %v1198 = vunpack.c.l.b16 %v1182
    %v1199 = vpack.c.b16 %v1196, %v1195
    %v1200 = vpack.c.b16 %v1198, %v1197
    %v1204 = vsel %vm288, %v1183, 0
    %1206 = vmatprep.subr.bf16.mxu0 0
    %1207 = vmatpush1.bf16.msra.mxu0 %v1199
    %1208 = vmatprep.subr.bf16.mxu0 0
    %1209 = vmatpush1.bf16.msra.mxu0 %v1200
    %1210 = vmatprep.subr.bf16.mxu0 0
    %1211 = vmatpush1.bf16.msra.mxu0 0
    %1212 = vmatprep.subr.bf16.mxu0 0
    %1213 = vmatpush1.bf16.msra.mxu0 0
    %1214 = vmatprep.subr.bf16.mxu0 0
    %1215 = vmatpush1.bf16.msra.mxu0 0
    %1216 = vmatprep.subr.bf16.mxu0 0
    %1217 = vmatpush1.bf16.msra.mxu0 0
    %1218 = vmatprep.subr.bf16.mxu0 0
    %1219 = vmatpush1.bf16.msra.mxu0 0
    %1220 = vmatprep.subr.bf16.mxu0 0
    %1221 = vmatpush1.bf16.msra.mxu0 0
    %1222 = vmatprep.subr.bf16.mxu0 0
    %1223 = vmatpush1.bf16.msra.mxu0 0
    %1224 = vmatprep.subr.bf16.mxu0 0
    %1225 = vmatpush1.bf16.msra.mxu0 0
    %1226 = vmatprep.subr.bf16.mxu0 0
    %1227 = vmatpush1.bf16.msra.mxu0 0
    %1228 = vmatprep.subr.bf16.mxu0 0
    %1229 = vmatpush1.bf16.msra.mxu0 0
    %1230 = vmatprep.subr.bf16.mxu0 0
    %1231 = vmatpush1.bf16.msra.mxu0 0
    %1232 = vmatprep.subr.bf16.mxu0 0
    %1233 = vmatpush1.bf16.msra.mxu0 0
    %1234 = vmatprep.subr.bf16.mxu0 0
    %1235 = vmatpush1.bf16.msra.mxu0 0
    %1236 = vmatprep.subr.bf16.mxu0 0
    %1237 = vmatpush1.bf16.msra.mxu0 0
    %1238 = vmatprep.mubr.bf16.mxu0 0
    %1239 = vmatmul.mubr.bf16.gmra.mrb[0].mxu0 %v1204
    %v1240 = vpop.f32.mrb[0].mxu0
    %v1241 = vadd.f32 %v1189, %v1240
    %v1242 = vpop.f32.mrb[0].mxu0
    %v1243 = vpop.f32.mrb[0].mxu0
    %v1244 = vadd.f32 %v1189, %v1243
    %v1245 = vpop.f32.mrb[0].mxu0
    %1246 = vdwg.mxu0
    %v1247 = vld [vmem:[%s8] sm:$0xf]
    %v1248 = vpack.c.bf16 %v1244, %v1241
    %v1249 = vld [vmem:[%s9] sm:$0x1]
    %v1251 = vlaneseq
    %v1252 = vshrl.u32 %v1251, 7
    %v1253 = vsub.s32 0, %v1252
    %v1254 = vrot.slane %v1249, %v1253
    %vm1256 = vcmask 64512
    %v1258 = vsel %vm1256, %v1248, 0
    %vm1260 = vcmask 1043456
    %v1262 = vsel %vm1260, %v1247, 0
    %1264 = vmatprep.subr.bf16.mxu0 0
    %1265 = vmatpush1.bf16.msra.mxu0 %v1262
    %1266 = vmatprep.subr.bf16.mxu0 0
    %1267 = vmatpush1.bf16.msra.mxu0 0
    %1268 = vmatprep.subr.bf16.mxu0 0
    %1269 = vmatpush1.bf16.msra.mxu0 0
    %1270 = vmatprep.subr.bf16.mxu0 0
    %1271 = vmatpush1.bf16.msra.mxu0 0
    %1272 = vmatprep.subr.bf16.mxu0 0
    %1273 = vmatpush1.bf16.msra.mxu0 0
    %1274 = vmatprep.subr.bf16.mxu0 0
    %1275 = vmatpush1.bf16.msra.mxu0 0
    %1276 = vmatprep.subr.bf16.mxu0 0
    %1277 = vmatpush1.bf16.msra.mxu0 0
    %1278 = vmatprep.subr.bf16.mxu0 0
    %1279 = vmatpush1.bf16.msra.mxu0 0
    %1280 = vmatprep.subr.bf16.mxu0 0
    %1281 = vmatpush1.bf16.msra.mxu0 0
    %1282 = vmatprep.subr.bf16.mxu0 0
    %1283 = vmatpush1.bf16.msra.mxu0 0
    %1284 = vmatprep.subr.bf16.mxu0 0
    %1285 = vmatpush1.bf16.msra.mxu0 0
    %1286 = vmatprep.subr.bf16.mxu0 0
    %1287 = vmatpush1.bf16.msra.mxu0 0
    %1288 = vmatprep.subr.bf16.mxu0 0
    %1289 = vmatpush1.bf16.msra.mxu0 0
    %1290 = vmatprep.subr.bf16.mxu0 0
    %1291 = vmatpush1.bf16.msra.mxu0 0
    %1292 = vmatprep.subr.bf16.mxu0 0
    %1293 = vmatpush1.bf16.msra.mxu0 0
    %1294 = vmatprep.subr.bf16.mxu0 0
    %1295 = vmatpush1.bf16.msra.mxu0 0
    %1296 = vmatprep.mubr.bf16.mxu0 0
    %1297 = vmatmul.mubr.bf16.gmra.mrb[0].mxu0 %v1258
    %v1298 = vpop.f32.mrb[0].mxu0
    %v1299 = vadd.f32 %v1254, %v1298
    %v1300 = vpop.f32.mrb[0].mxu0
    %v1301 = vpop.f32.mrb[0].mxu0
    %v1302 = vadd.f32 %v1254, %v1301
    %v1303 = vpop.f32.mrb[0].mxu0
    %1304 = vdwg.mxu0
    %v1305 = vmax.f32 %v1299, 0.0
    %v1306 = vmax.f32 %v1302, 0.0
    %1309 = vrot.lane.b32.xlu0 %v1104, 64
    %v1310 = vpop.permute.xlu0 %1309
    %1311 = vrot.lane.b32.xlu0 %v1105, 64
    %v1312 = vpop.permute.xlu0 %1311
    %1317 = vrot.lane.b32.xlu0 %v1305, 32
    %v1318 = vpop.permute.xlu0 %1317
    %1319 = vrot.lane.b32.xlu0 %v1306, 32
    %v1320 = vpop.permute.xlu0 %1319
    %v1323 = vsel %vm288, %v1310, %v1318
    %v1324 = vsel %vm288, %v1312, %v1320
    %v1325 = vld [vmem:[%s10] sm:$0xf]
    %v1326 = vld [vmem:[%s10 + $0x4] sm:$0xf]
    %v1327 = vld [vmem:[%s10 + $0x8] sm:$0xf]
    %v1328 = vld [vmem:[%s10 + $0xc] sm:$0xf]
    %v1329 = vld [vmem:[%s10 + $0x10] sm:$0xf]
    %v1330 = vld [vmem:[%s10 + $0x14] sm:$0xf]
    %v1331 = vld [vmem:[%s10 + $0x18] sm:$0xf]
    %v1332 = vld [vmem:[%s10 + $0x1c] sm:$0xf]
    %v1333 = vpack.c.bf16 %v1324, %v1323
    %v1334 = vld [vmem:[%s11] sm:$0x1]
    %v1336 = vlaneseq
    %v1337 = vshrl.u32 %v1336, 7
    %v1338 = vsub.s32 0, %v1337
    %v1339 = vrot.slane %v1334, %v1338
    %v1349 = vunpack.c.l.b16 %v1325
    %v1350 = vunpack.c.l.b16 %v1326
    %v1351 = vunpack.c.l.b16 %v1327
    %v1352 = vunpack.c.l.b16 %v1328
    %v1353 = vunpack.c.l.b16 %v1329
    %v1354 = vunpack.c.l.b16 %v1330
    %v1355 = vunpack.c.l.b16 %v1331
    %v1356 = vunpack.c.l.b16 %v1332
    %v1357 = vpack.c.b16 %v1350, %v1349
    %v1358 = vpack.c.b16 %v1352, %v1351
    %v1359 = vpack.c.b16 %v1354, %v1353
    %v1360 = vpack.c.b16 %v1356, %v1355
    %vm1365 = vcmask 523264
    %v1367 = vsel %vm1365, %v1333, 0
    %1369 = vmatprep.subr.bf16.mxu0 0
    %1370 = vmatpush1.bf16.msra.mxu0 %v1357
    %1371 = vmatprep.subr.bf16.mxu0 0
    %1372 = vmatpush1.bf16.msra.mxu0 %v1358
    %1373 = vmatprep.subr.bf16.mxu0 0
    %1374 = vmatpush1.bf16.msra.mxu0 %v1359
    %1375 = vmatprep.subr.bf16.mxu0 0
    %1376 = vmatpush1.bf16.msra.mxu0 %v1360
    %1377 = vmatprep.subr.bf16.mxu0 0
    %1378 = vmatpush1.bf16.msra.mxu0 0
    %1379 = vmatprep.subr.bf16.mxu0 0
    %1380 = vmatpush1.bf16.msra.mxu0 0
    %1381 = vmatprep.subr.bf16.mxu0 0
    %1382 = vmatpush1.bf16.msra.mxu0 0
    %1383 = vmatprep.subr.bf16.mxu0 0
    %1384 = vmatpush1.bf16.msra.mxu0 0
    %1385 = vmatprep.subr.bf16.mxu0 0
    %1386 = vmatpush1.bf16.msra.mxu0 0
    %1387 = vmatprep.subr.bf16.mxu0 0
    %1388 = vmatpush1.bf16.msra.mxu0 0
    %1389 = vmatprep.subr.bf16.mxu0 0
    %1390 = vmatpush1.bf16.msra.mxu0 0
    %1391 = vmatprep.subr.bf16.mxu0 0
    %1392 = vmatpush1.bf16.msra.mxu0 0
    %1393 = vmatprep.subr.bf16.mxu0 0
    %1394 = vmatpush1.bf16.msra.mxu0 0
    %1395 = vmatprep.subr.bf16.mxu0 0
    %1396 = vmatpush1.bf16.msra.mxu0 0
    %1397 = vmatprep.subr.bf16.mxu0 0
    %1398 = vmatpush1.bf16.msra.mxu0 0
    %1399 = vmatprep.subr.bf16.mxu0 0
    %1400 = vmatpush1.bf16.msra.mxu0 0
    %1401 = vmatprep.mubr.bf16.mxu0 0
    %1402 = vmatmul.mubr.bf16.gmra.mrb[0].mxu0 %v1367
    %v1403 = vpop.f32.mrb[0].mxu0
    %v1404 = vadd.f32 %v1339, %v1403
    %v1405 = vpop.f32.mrb[0].mxu0
    %v1406 = vpop.f32.mrb[0].mxu0
    %v1407 = vadd.f32 %v1339, %v1406
    %v1408 = vpop.f32.mrb[0].mxu0
    %1409 = vdwg.mxu0
    %v1410 = vmax.f32 %v1404, 0.0
    %v1411 = vmax.f32 %v1407, 0.0
    %v1412 = vsel %vm1365, %v1410, -inf
    %v1413 = vrot.slane %v1412, 4
    %v1414 = vmax.f32 %v1412, %v1413
    %v1415 = vrot.slane %v1414, 2
    %v1416 = vmax.f32 %v1414, %v1415
    %v1417 = vrot.slane %v1416, 1
    %v1418 = vmax.f32 %v1416, %v1417
    %v1419 = vsel %vm1365, %v1411, -inf
    %v1420 = vrot.slane %v1419, 4
    %v1421 = vmax.f32 %v1419, %v1420
    %v1422 = vrot.slane %v1421, 2
    %v1423 = vmax.f32 %v1421, %v1422
    %v1424 = vrot.slane %v1423, 1
    %v1425 = vmax.f32 %v1423, %v1424
    %vm1426 = vcmp.eq.f32.partialorder %v1410, %v1418
    %vm1427 = vcmp.eq.f32.partialorder %v1411, %v1425
    %v1428 = vsel %vm1426, 1, 0
    %v1429 = vsel %vm1427, 1, 0
    %v1430 = vcvt.s32.f32 %v1428
    %v1431 = vcvt.s32.f32 %v1429
    %v1432 = vsel %vm1365, %v1430, 0.0
    %v1433 = vrot.slane %v1432, 4
    %v1434 = vadd.f32 %v1432, %v1433
    %v1435 = vrot.slane %v1434, 2
    %v1436 = vadd.f32 %v1434, %v1435
    %v1437 = vrot.slane %v1436, 1
    %v1438 = vadd.f32 %v1436, %v1437
    %v1439 = vsel %vm1365, %v1431, 0.0
    %v1440 = vrot.slane %v1439, 4
    %v1441 = vadd.f32 %v1439, %v1440
    %v1442 = vrot.slane %v1441, 2
    %v1443 = vadd.f32 %v1441, %v1442
    %v1444 = vrot.slane %v1443, 1
    %v1445 = vadd.f32 %v1443, %v1444
    %v1446 = vsel %vm1426, 0.0, %v1410
    %v1447 = vsel %vm1427, 0.0, %v1411
    %v1448 = vsel %vm1365, %v1446, -inf
    %v1449 = vrot.slane %v1448, 4
    %v1450 = vmax.f32 %v1448, %v1449
    %v1451 = vrot.slane %v1450, 2
    %v1452 = vmax.f32 %v1450, %v1451
    %v1453 = vrot.slane %v1452, 1
    %v1454 = vmax.f32 %v1452, %v1453
    %v1455 = vsel %vm1365, %v1447, -inf
    %v1456 = vrot.slane %v1455, 4
    %v1457 = vmax.f32 %v1455, %v1456
    %v1458 = vrot.slane %v1457, 2
    %v1459 = vmax.f32 %v1457, %v1458
    %v1460 = vrot.slane %v1459, 1
    %v1461 = vmax.f32 %v1459, %v1460
    %vm1462 = vcmp.gt.f32.partialorder %v1438, 1.0
    %vm1463 = vcmp.gt.f32.partialorder %v1445, 1.0
    %v1464 = vsel %vm1462, %v1418, %v1454
    %v1465 = vsel %vm1463, %v1425, %v1461
    %v1466 = vsel %vm1426, %v1464, %v1418
    %v1467 = vsel %vm1427, %v1465, %v1425
    %v1468 = vld [vmem:[%s12] sm:$0xf]
    %v1469 = vld [vmem:[%s12 + $0x4] sm:$0xf]
    %v1470 = vld [vmem:[%s12 + $0x8] sm:$0xf]
    %v1471 = vld [vmem:[%s12 + $0xc] sm:$0xf]
    %v1472 = vld [vmem:[%s12 + $0x10] sm:$0xf]
    %v1473 = vld [vmem:[%s12 + $0x14] sm:$0xf]
    %v1474 = vld [vmem:[%s12 + $0x18] sm:$0xf]
    %v1475 = vld [vmem:[%s12 + $0x1c] sm:$0xf]
    %v1476 = vld [vmem:[%s12 + $0x20] sm:$0xf]
    %v1477 = vld [vmem:[%s12 + $0x24] sm:$0xf]
    %v1478 = vld [vmem:[%s12 + $0x28] sm:$0xf]
    %v1479 = vld [vmem:[%s12 + $0x2c] sm:$0xf]
    %v1480 = vld [vmem:[%s12 + $0x30] sm:$0xf]
    %v1481 = vld [vmem:[%s12 + $0x34] sm:$0xf]
    %v1482 = vld [vmem:[%s12 + $0x38] sm:$0xf]
    %v1483 = vld [vmem:[%s12 + $0x3c] sm:$0xf]
    %v1484 = vpack.c.bf16 %v1467, %v1466
    %v1493 = vunpack.c.l.b16 %v1476
    %v1494 = vunpack.c.l.b16 %v1477
    %v1495 = vunpack.c.l.b16 %v1478
    %v1496 = vunpack.c.l.b16 %v1479
    %v1497 = vunpack.c.l.b16 %v1480
    %v1498 = vunpack.c.l.b16 %v1481
    %v1499 = vunpack.c.l.b16 %v1482
    %v1500 = vunpack.c.l.b16 %v1483
    %v1501 = vpack.c.b16 %v1494, %v1493
    %v1502 = vpack.c.b16 %v1496, %v1495
    %v1503 = vpack.c.b16 %v1498, %v1497
    %v1504 = vpack.c.b16 %v1500, %v1499
    %v1510 = vsel %vm1365, %v1484, 0
    %1512 = vmatprep.subr.bf16.mxu0 0
    %1513 = vmatpush1.bf16.msra.mxu0 %v1501
    %1514 = vmatprep.subr.bf16.mxu0 0
    %1515 = vmatpush1.bf16.msra.mxu0 %v1502
    %1516 = vmatprep.subr.bf16.mxu0 0
    %1517 = vmatpush1.bf16.msra.mxu0 %v1503
    %1518 = vmatprep.subr.bf16.mxu0 0
    %1519 = vmatpush1.bf16.msra.mxu0 %v1504
    %1520 = vmatprep.subr.bf16.mxu0 0
    %1521 = vmatpush1.bf16.msra.mxu0 0
    %1522 = vmatprep.subr.bf16.mxu0 0
    %1523 = vmatpush1.bf16.msra.mxu0 0
    %1524 = vmatprep.subr.bf16.mxu0 0
    %1525 = vmatpush1.bf16.msra.mxu0 0
    %1526 = vmatprep.subr.bf16.mxu0 0
    %1527 = vmatpush1.bf16.msra.mxu0 0
    %1528 = vmatprep.subr.bf16.mxu0 0
    %1529 = vmatpush1.bf16.msra.mxu0 0
    %1530 = vmatprep.subr.bf16.mxu0 0
    %1531 = vmatpush1.bf16.msra.mxu0 0
    %1532 = vmatprep.subr.bf16.mxu0 0
    %1533 = vmatpush1.bf16.msra.mxu0 0
    %1534 = vmatprep.subr.bf16.mxu0 0
    %1535 = vmatpush1.bf16.msra.mxu0 0
    %1536 = vmatprep.subr.bf16.mxu0 0
    %1537 = vmatpush1.bf16.msra.mxu0 0
    %1538 = vmatprep.subr.bf16.mxu0 0
    %1539 = vmatpush1.bf16.msra.mxu0 0
    %1540 = vmatprep.subr.bf16.mxu0 0
    %1541 = vmatpush1.bf16.msra.mxu0 0
    %1542 = vmatprep.subr.bf16.mxu0 0
    %1543 = vmatpush1.bf16.msra.mxu0 0
    %1544 = vmatprep.mubr.bf16.mxu0 0
    %1545 = vmatmul.mubr.bf16.gmra.mrb[0].mxu0 %v1510
    %v1546 = vpop.f32.mrb[0].mxu0
    %v1547 = vadd.f32 0.0, %v1546
    %v1548 = vpop.f32.mrb[0].mxu0
    %v1549 = vpop.f32.mrb[0].mxu0
    %v1550 = vadd.f32 0.0, %v1549
    %v1551 = vpop.f32.mrb[0].mxu0
    %1552 = vdwg.mxu0
    %v1561 = vunpack.c.l.b16 %v1468
    %v1562 = vunpack.c.l.b16 %v1469
    %v1563 = vunpack.c.l.b16 %v1470
    %v1564 = vunpack.c.l.b16 %v1471
    %v1565 = vunpack.c.l.b16 %v1472
    %v1566 = vunpack.c.l.b16 %v1473
    %v1567 = vunpack.c.l.b16 %v1474
    %v1568 = vunpack.c.l.b16 %v1475
    %v1569 = vpack.c.b16 %v1562, %v1561
    %v1570 = vpack.c.b16 %v1564, %v1563
    %v1571 = vpack.c.b16 %v1566, %v1565
    %v1572 = vpack.c.b16 %v1568, %v1567
    %1577 = vmatprep.subr.bf16.mxu0 0
    %1578 = vmatpush1.bf16.msra.mxu0 %v1569
    %1579 = vmatprep.subr.bf16.mxu0 0
    %1580 = vmatpush1.bf16.msra.mxu0 %v1570
    %1581 = vmatprep.subr.bf16.mxu0 0
    %1582 = vmatpush1.bf16.msra.mxu0 %v1571
    %1583 = vmatprep.subr.bf16.mxu0 0
    %1584 = vmatpush1.bf16.msra.mxu0 %v1572
    %1585 = vmatprep.subr.bf16.mxu0 0
    %1586 = vmatpush1.bf16.msra.mxu0 0
    %1587 = vmatprep.subr.bf16.mxu0 0
    %1588 = vmatpush1.bf16.msra.mxu0 0
    %1589 = vmatprep.subr.bf16.mxu0 0
    %1590 = vmatpush1.bf16.msra.mxu0 0
    %1591 = vmatprep.subr.bf16.mxu0 0
    %1592 = vmatpush1.bf16.msra.mxu0 0
    %1593 = vmatprep.subr.bf16.mxu0 0
    %1594 = vmatpush1.bf16.msra.mxu0 0
    %1595 = vmatprep.subr.bf16.mxu0 0
    %1596 = vmatpush1.bf16.msra.mxu0 0
    %1597 = vmatprep.subr.bf16.mxu0 0
    %1598 = vmatpush1.bf16.msra.mxu0 0
    %1599 = vmatprep.subr.bf16.mxu0 0
    %1600 = vmatpush1.bf16.msra.mxu0 0
    %1601 = vmatprep.subr.bf16.mxu0 0
    %1602 = vmatpush1.bf16.msra.mxu0 0
    %1603 = vmatprep.subr.bf16.mxu0 0
    %1604 = vmatpush1.bf16.msra.mxu0 0
    %1605 = vmatprep.subr.bf16.mxu0 0
    %1606 = vmatpush1.bf16.msra.mxu0 0
    %1607 = vmatprep.subr.bf16.mxu0 0
    %1608 = vmatpush1.bf16.msra.mxu0 0
    %1609 = vmatprep.mubr.bf16.mxu0 0
    %1610 = vmatmul.mubr.bf16.gmra.mrb[0].mxu0 %v1367
    %v1611 = vpop.f32.mrb[0].mxu0
    %v1612 = vadd.f32 %v1547, %v1611
    %v1613 = vpop.f32.mrb[0].mxu0
    %v1614 = vpop.f32.mrb[0].mxu0
    %v1615 = vadd.f32 %v1550, %v1614
    %v1616 = vpop.f32.mrb[0].mxu0
    %1617 = vdwg.mxu0
    %v1618 = vld [vmem:[%s13] sm:$0x1]
    %v1620 = vlaneseq
    %v1621 = vshrl.u32 %v1620, 7
    %v1622 = vsub.s32 0, %v1621
    %v1623 = vrot.slane %v1618, %v1622
    %v1625 = vadd.f32 %v1612, %v1623
    %v1626 = vadd.f32 %v1615, %v1623
    %v1627 = vtanh.pop %v1625
    %v1628 = vtanh.pop %v1626
    %v1629 = vld [vmem:[%s14] sm:$0xf]
    %v1630 = vld [vmem:[%s14 + $0x4] sm:$0xf]
    %v1631 = vld [vmem:[%s14 + $0x8] sm:$0xf]
    %v1632 = vld [vmem:[%s14 + $0xc] sm:$0xf]
    %v1633 = vpack.c.bf16 %v1628, %v1627
    %v1634 = vld [vmem:[%s15] sm:$0x1]
    %v1636 = vlaneseq
    %v1637 = vshrl.u32 %v1636, 7
    %v1638 = vsub.s32 0, %v1637
    %v1639 = vrot.slane %v1634, %v1638
    %v1645 = vunpack.c.l.b16 %v1629
    %v1646 = vunpack.c.l.b16 %v1630
    %v1647 = vunpack.c.l.b16 %v1631
    %v1648 = vunpack.c.l.b16 %v1632
    %v1649 = vpack.c.b16 %v1646, %v1645
    %v1650 = vpack.c.b16 %v1648, %v1647
    %v1654 = vsel %vm288, %v1633, 0
    %1656 = vmatprep.subr.bf16.mxu0 0
    %1657 = vmatpush1.bf16.msra.mxu0 %v1649
    %1658 = vmatprep.subr.bf16.mxu0 0
    %1659 = vmatpush1.bf16.msra.mxu0 %v1650
    %1660 = vmatprep.subr.bf16.mxu0 0
    %1661 = vmatpush1.bf16.msra.mxu0 0
    %1662 = vmatprep.subr.bf16.mxu0 0
    %1663 = vmatpush1.bf16.msra.mxu0 0
    %1664 = vmatprep.subr.bf16.mxu0 0
    %1665 = vmatpush1.bf16.msra.mxu0 0
    %1666 = vmatprep.subr.bf16.mxu0 0
    %1667 = vmatpush1.bf16.msra.mxu0 0
    %1668 = vmatprep.subr.bf16.mxu0 0
    %1669 = vmatpush1.bf16.msra.mxu0 0
    %1670 = vmatprep.subr.bf16.mxu0 0
    %1671 = vmatpush1.bf16.msra.mxu0 0
    %1672 = vmatprep.subr.bf16.mxu0 0
    %1673 = vmatpush1.bf16.msra.mxu0 0
    %1674 = vmatprep.subr.bf16.mxu0 0
    %1675 = vmatpush1.bf16.msra.mxu0 0
    %1676 = vmatprep.subr.bf16.mxu0 0
    %1677 = vmatpush1.bf16.msra.mxu0 0
    %1678 = vmatprep.subr.bf16.mxu0 0
    %1679 = vmatpush1.bf16.msra.mxu0 0
    %1680 = vmatprep.subr.bf16.mxu0 0
    %1681 = vmatpush1.bf16.msra.mxu0 0
    %1682 = vmatprep.subr.bf16.mxu0 0
    %1683 = vmatpush1.bf16.msra.mxu0 0
    %1684 = vmatprep.subr.bf16.mxu0 0
    %1685 = vmatpush1.bf16.msra.mxu0 0
    %1686 = vmatprep.subr.bf16.mxu0 0
    %1687 = vmatpush1.bf16.msra.mxu0 0
    %1688 = vmatprep.mubr.bf16.mxu0 0
    %1689 = vmatmul.mubr.bf16.gmra.mrb[0].mxu0 %v1654
    %v1690 = vpop.f32.mrb[0].mxu0
    %v1691 = vadd.f32 %v1639, %v1690
    %v1692 = vpop.f32.mrb[0].mxu0
    %v1693 = vpop.f32.mrb[0].mxu0
    %v1694 = vadd.f32 %v1639, %v1693
    %v1695 = vpop.f32.mrb[0].mxu0
    %1696 = vdwg.mxu0
    %v1697 = vmax.f32 %v1691, 0.0
    %v1698 = vmax.f32 %v1694, 0.0
    %v1699 = vsel %vm288, %v1697, -inf
    %v1700 = vrot.slane %v1699, 4
    %v1701 = vmax.f32 %v1699, %v1700
    %v1702 = vrot.slane %v1701, 2
    %v1703 = vmax.f32 %v1701, %v1702
    %v1704 = vrot.slane %v1703, 1
    %v1705 = vmax.f32 %v1703, %v1704
    %v1706 = vsel %vm288, %v1698, -inf
    %v1707 = vrot.slane %v1706, 4
    %v1708 = vmax.f32 %v1706, %v1707
    %v1709 = vrot.slane %v1708, 2
    %v1710 = vmax.f32 %v1708, %v1709
    %v1711 = vrot.slane %v1710, 1
    %v1712 = vmax.f32 %v1710, %v1711
    %vm1713 = vcmp.eq.f32.partialorder %v1697, %v1705
    %vm1714 = vcmp.eq.f32.partialorder %v1698, %v1712
    %v1715 = vsel %vm1713, 1, 0
    %v1716 = vsel %vm1714, 1, 0
    %v1717 = vcvt.s32.f32 %v1715
    %v1718 = vcvt.s32.f32 %v1716
    %v1719 = vsel %vm288, %v1717, 0.0
    %v1720 = vrot.slane %v1719, 4
    %v1721 = vadd.f32 %v1719, %v1720
    %v1722 = vrot.slane %v1721, 2
    %v1723 = vadd.f32 %v1721, %v1722
    %v1724 = vrot.slane %v1723, 1
    %v1725 = vadd.f32 %v1723, %v1724
    %v1726 = vsel %vm288, %v1718, 0.0
    %v1727 = vrot.slane %v1726, 4
    %v1728 = vadd.f32 %v1726, %v1727
    %v1729 = vrot.slane %v1728, 2
    %v1730 = vadd.f32 %v1728, %v1729
    %v1731 = vrot.slane %v1730, 1
    %v1732 = vadd.f32 %v1730, %v1731
    %v1733 = vsel %vm1713, 0.0, %v1697
    %v1734 = vsel %vm1714, 0.0, %v1698
    %v1735 = vsel %vm288, %v1733, -inf
    %v1736 = vrot.slane %v1735, 4
    %v1737 = vmax.f32 %v1735, %v1736
    %v1738 = vrot.slane %v1737, 2
    %v1739 = vmax.f32 %v1737, %v1738
    %v1740 = vrot.slane %v1739, 1
    %v1741 = vmax.f32 %v1739, %v1740
    %v1742 = vsel %vm288, %v1734, -inf
    %v1743 = vrot.slane %v1742, 4
    %v1744 = vmax.f32 %v1742, %v1743
    %v1745 = vrot.slane %v1744, 2
    %v1746 = vmax.f32 %v1744, %v1745
    %v1747 = vrot.slane %v1746, 1
    %v1748 = vmax.f32 %v1746, %v1747
    %vm1749 = vcmp.gt.f32.partialorder %v1725, 1.0
    %vm1750 = vcmp.gt.f32.partialorder %v1732, 1.0
    %v1751 = vsel %vm1749, %v1705, %v1741
    %v1752 = vsel %vm1750, %v1712, %v1748
    %v1753 = vsel %vm1713, %v1751, %v1705
    %v1754 = vsel %vm1714, %v1752, %v1712
    %v1755 = vld [vmem:[%s16] sm:$0xf]
    %v1756 = vld [vmem:[%s16 + $0x4] sm:$0xf]
    %v1757 = vld [vmem:[%s16 + $0x8] sm:$0xf]
    %v1758 = vld [vmem:[%s16 + $0xc] sm:$0xf]
    %v1759 = vld [vmem:[%s16 + $0x10] sm:$0xf]
    %v1760 = vld [vmem:[%s16 + $0x14] sm:$0xf]
    %v1761 = vld [vmem:[%s16 + $0x18] sm:$0xf]
    %v1762 = vld [vmem:[%s16 + $0x1c] sm:$0xf]
    %v1763 = vpack.c.bf16 %v1754, %v1753
    %v1768 = vunpack.c.l.b16 %v1759
    %v1769 = vunpack.c.l.b16 %v1760
    %v1770 = vunpack.c.l.b16 %v1761
    %v1771 = vunpack.c.l.b16 %v1762
    %v1772 = vpack.c.b16 %v1769, %v1768
    %v1773 = vpack.c.b16 %v1771, %v1770
    %v1777 = vsel %vm288, %v1763, 0
    %1779 = vmatprep.subr.bf16.mxu0 0
    %1780 = vmatpush1.bf16.msra.mxu0 %v1772
    %1781 = vmatprep.subr.bf16.mxu0 0
    %1782 = vmatpush1.bf16.msra.mxu0 %v1773
    %1783 = vmatprep.subr.bf16.mxu0 0
    %1784 = vmatpush1.bf16.msra.mxu0 0
    %1785 = vmatprep.subr.bf16.mxu0 0
    %1786 = vmatpush1.bf16.msra.mxu0 0
    %1787 = vmatprep.subr.bf16.mxu0 0
    %1788 = vmatpush1.bf16.msra.mxu0 0
    %1789 = vmatprep.subr.bf16.mxu0 0
    %1790 = vmatpush1.bf16.msra.mxu0 0
    %1791 = vmatprep.subr.bf16.mxu0 0
    %1792 = vmatpush1.bf16.msra.mxu0 0
    %1793 = vmatprep.subr.bf16.mxu0 0
    %1794 = vmatpush1.bf16.msra.mxu0 0
    %1795 = vmatprep.subr.bf16.mxu0 0
    %1796 = vmatpush1.bf16.msra.mxu0 0
    %1797 = vmatprep.subr.bf16.mxu0 0
    %1798 = vmatpush1.bf16.msra.mxu0 0
    %1799 = vmatprep.subr.bf16.mxu0 0
    %1800 = vmatpush1.bf16.msra.mxu0 0
    %1801 = vmatprep.subr.bf16.mxu0 0
    %1802 = vmatpush1.bf16.msra.mxu0 0
    %1803 = vmatprep.subr.bf16.mxu0 0
    %1804 = vmatpush1.bf16.msra.mxu0 0
    %1805 = vmatprep.subr.bf16.mxu0 0
    %1806 = vmatpush1.bf16.msra.mxu0 0
    %1807 = vmatprep.subr.bf16.mxu0 0
    %1808 = vmatpush1.bf16.msra.mxu0 0
    %1809 = vmatprep.subr.bf16.mxu0 0
    %1810 = vmatpush1.bf16.msra.mxu0 0
    %1811 = vmatprep.mubr.bf16.mxu0 0
    %1812 = vmatmul.mubr.bf16.gmra.mrb[0].mxu0 %v1777
    %v1813 = vpop.f32.mrb[0].mxu0
    %v1814 = vadd.f32 0.0, %v1813
    %v1815 = vpop.f32.mrb[0].mxu0
    %v1816 = vpop.f32.mrb[0].mxu0
    %v1817 = vadd.f32 0.0, %v1816
    %v1818 = vpop.f32.mrb[0].mxu0
    %1819 = vdwg.mxu0
    %v1824 = vunpack.c.l.b16 %v1755
    %v1825 = vunpack.c.l.b16 %v1756
    %v1826 = vunpack.c.l.b16 %v1757
    %v1827 = vunpack.c.l.b16 %v1758
    %v1828 = vpack.c.b16 %v1825, %v1824
    %v1829 = vpack.c.b16 %v1827, %v1826
    %1832 = vmatprep.subr.bf16.mxu0 0
    %1833 = vmatpush1.bf16.msra.mxu0 %v1828
    %1834 = vmatprep.subr.bf16.mxu0 0
    %1835 = vmatpush1.bf16.msra.mxu0 %v1829
    %1836 = vmatprep.subr.bf16.mxu0 0
    %1837 = vmatpush1.bf16.msra.mxu0 0
    %1838 = vmatprep.subr.bf16.mxu0 0
    %1839 = vmatpush1.bf16.msra.mxu0 0
    %1840 = vmatprep.subr.bf16.mxu0 0
    %1841 = vmatpush1.bf16.msra.mxu0 0
    %1842 = vmatprep.subr.bf16.mxu0 0
    %1843 = vmatpush1.bf16.msra.mxu0 0
    %1844 = vmatprep.subr.bf16.mxu0 0
    %1845 = vmatpush1.bf16.msra.mxu0 0
    %1846 = vmatprep.subr.bf16.mxu0 0
    %1847 = vmatpush1.bf16.msra.mxu0 0
    %1848 = vmatprep.subr.bf16.mxu0 0
    %1849 = vmatpush1.bf16.msra.mxu0 0
    %1850 = vmatprep.subr.bf16.mxu0 0
    %1851 = vmatpush1.bf16.msra.mxu0 0
    %1852 = vmatprep.subr.bf16.mxu0 0
    %1853 = vmatpush1.bf16.msra.mxu0 0
    %1854 = vmatprep.subr.bf16.mxu0 0
    %1855 = vmatpush1.bf16.msra.mxu0 0
    %1856 = vmatprep.subr.bf16.mxu0 0
    %1857 = vmatpush1.bf16.msra.mxu0 0
    %1858 = vmatprep.subr.bf16.mxu0 0
    %1859 = vmatpush1.bf16.msra.mxu0 0
    %1860 = vmatprep.subr.bf16.mxu0 0
    %1861 = vmatpush1.bf16.msra.mxu0 0
    %1862 = vmatprep.subr.bf16.mxu0 0
    %1863 = vmatpush1.bf16.msra.mxu0 0
    %1864 = vmatprep.mubr.bf16.mxu0 0
    %1865 = vmatmul.mubr.bf16.gmra.mrb[0].mxu0 %v1654
    %v1866 = vpop.f32.mrb[0].mxu0
    %v1867 = vadd.f32 %v1814, %v1866
    %v1868 = vpop.f32.mrb[0].mxu0
    %v1869 = vpop.f32.mrb[0].mxu0
    %v1870 = vadd.f32 %v1817, %v1869
    %v1871 = vpop.f32.mrb[0].mxu0
    %1872 = vdwg.mxu0
    %v1873 = vld [vmem:[%s17] sm:$0x1]
    %v1875 = vlaneseq
    %v1876 = vshrl.u32 %v1875, 7
    %v1877 = vsub.s32 0, %v1876
    %v1878 = vrot.slane %v1873, %v1877
    %v1880 = vadd.f32 %v1867, %v1878
    %v1881 = vadd.f32 %v1870, %v1878
    %v1882 = vrot.slane %v1880, 4
    %v1883 = vadd.f32 %v1880, %v1882
    %v1884 = vrot.slane %v1883, 2
    %v1885 = vadd.f32 %v1883, %v1884
    %v1886 = vrot.slane %v1885, 1
    %v1887 = vadd.f32 %v1885, %v1886
    %v1888 = vrot.slane %v1881, 4
    %v1889 = vadd.f32 %v1881, %v1888
    %v1890 = vrot.slane %v1889, 2
    %v1891 = vadd.f32 %v1889, %v1890
    %v1892 = vrot.slane %v1891, 1
    %v1893 = vadd.f32 %v1891, %v1892
    %v1894 = vmul.f32 %v1887, 0.125
    %v1895 = vmul.f32 %v1893, 0.125
    %vm1898 = vcmask 1041409
    %v1899 = vsel %vm1898, %v1895, %v1894
    %1901 = vst [vmem:[#allocation3] sm:$0x3] %v1899
    // Predicated region
    $region74: #{tpu_custom_call.1} parent=1 // pred_check
      _
    $region75: #{tpu_custom_call.1} parent=1 // pred_check_branch
      %1903 = sbr.rel (0) target = $region77
    $region76: #{tpu_custom_call.1} parent=1 // pred_region
      %s1905 = ssub.s32 32, 32
      %1906 = vsyncadd [#allocation4], %s1905
      %s1908 = sshll.u32 [#allocation3], 4
      %s1909 = int_to_ptr.vmem [resolvable:$true] %s1908
      %1911 = dma.vmem_to_hbm [thread:$0]  %s1909, 32, %s18, [#allocation4]
    $region77: #{tpu_custom_call.1} parent=1 // pred_fallthru
      _
    // Predicated region
    $region78: #{tpu_custom_call.1} parent=1 // pred_check
      _
    $region79: #{tpu_custom_call.1} parent=1 // pred_check_branch
      %1913 = sbr.rel (0) target = $region81
    $region80: #{tpu_custom_call.1} parent=1 // pred_region
      %1914 = dma.done [#allocation4], 32
    $region81: #{tpu_custom_call.1} parent=1 // pred_fallthru
      _
    %1915 = vsyncpa [#allocation4], 1

</llo_original>
